<compile_context>
chip_gen: v5e
topology: v5e:2x2
jax: 0.10.0
libtpu: 0.0.40
codegen_flags: <defaults>
</compile_context>

<pallas_src>
import functools

import jax
import jax.numpy as jnp
from jax.experimental import pallas as pl
from jax.experimental.pallas import tpu as pltpu


# ---------------------------------------------------------------------------
# In-kernel helpers (all statistics in f32)
# ---------------------------------------------------------------------------
def _layer_norm(x, g, b, eps=1e-12):
    mu = jnp.mean(x, axis=-1, keepdims=True)
    var = jnp.mean((x - mu) ** 2, axis=-1, keepdims=True)
    return (x - mu) * jax.lax.rsqrt(var + eps) * g + b


def _softmax_rows(s, approx=True):
    m = jnp.max(s, axis=-1, keepdims=True)
    e = jnp.exp(s - m)
    d = jnp.sum(e, axis=-1, keepdims=True)
    if approx:
        return e * pl.reciprocal(d, approx=True)   # EUP slot; ~1e-3 rel error, OK for classification
    return e / d


# ---------------------------------------------------------------------------
# Fused encoder + classifier-head kernel.  grid = (num_layers,)
# ---------------------------------------------------------------------------
def _fused_model_kernel(num_heads,
                        mask_ref, x_hbm_ref,
                        wqkv_ref, bqkv_ref, wo_ref, bo_ref,
                        ln1g_ref, ln1b_ref,
                        w1_ref, b1_ref, w2_ref, b2_ref,
                        ln2g_ref, ln2b_ref,
                        embg_ref, embb_ref,
                        fcw_ref, fcb_ref,
                        probs_ref,
                        act_ref, qkv_ref, ctx_ref, copy_sem):
    layer = pl.program_id(0)
    last = pl.num_programs(0) - 1

    BS, H = act_ref.shape                      # (B*S, H) resident f32 activations
    B, S, _ = ctx_ref.shape
    hd = H // num_heads
    scale = 1.0 / (hd ** 0.5)

    # ---- layer 0 only: DMA pre-LN embeddings (HBM, pl.ANY) into the resident scratch, then LN
    @pl.when(layer == 0)
    def _():
        cp = pltpu.make_async_copy(x_hbm_ref, act_ref, copy_sem)
        cp.start()
        cp.wait()
        act_ref[...] = _layer_norm(act_ref[...], embg_ref[...], embb_ref[...])

    # ---- per-layer weights / params for this grid step (leading block dim of 1 dropped)
    wqkv = wqkv_ref[0]                         # (H, 3H)  bf16
    bqkv = bqkv_ref[0]                         # (1, 3H)  f32
    wo = wo_ref[0]                             # (H, H)   bf16
    bo = bo_ref[0]                             # (1, H)   f32
    ln1g = ln1g_ref[0]; ln1b = ln1b_ref[0]
    w1 = w1_ref[0]; b1 = b1_ref[0]             # (H, F) bf16 / (1, F) f32
    w2 = w2_ref[0]; b2 = b2_ref[0]             # (F, H) bf16 / (1, H) f32
    ln2g = ln2g_ref[0]; ln2b = ln2b_ref[0]

    # ---- fused QKV projection over the whole (B*S, H) slab (bf16 MXU, f32 accumulate)
    x = act_ref[...]                                                   # (BS, H) f32
    qkv = jnp.dot(x.astype(jnp.bfloat16), wqkv,
                  preferred_element_type=jnp.float32) + bqkv           # (BS, 3H) f32
    qkv_ref[...] = qkv.astype(jnp.bfloat16).reshape(B, S, 3 * H)       # lane-dense full store

    mask_add = mask_ref[...]                                           # (B, 1, S) f32, read once

    # ---- attention: static unroll over heads only; batch handled as the einsum batch dim
    for h in range(num_heads):
        q = qkv_ref[:, :, h * hd:(h + 1) * hd]                         # (B, S, hd) bf16 ref reads
        k = qkv_ref[:, :, H + h * hd:H + (h + 1) * hd]
        v = qkv_ref[:, :, 2 * H + h * hd:2 * H + (h + 1) * hd]
        s = jnp.einsum('bqd,bkd->bqk', q, k,
                       preferred_element_type=jnp.float32) * scale + mask_add
        p = _softmax_rows(s)                                           # f32 online-free softmax
        ctx_ref[:, :, h * hd:(h + 1) * hd] = jnp.einsum(
            'bqk,bkd->bqd', p.astype(jnp.bfloat16), v,
            preferred_element_type=jnp.float32).astype(jnp.bfloat16)

    # ---- output projection + residual + LN over the whole slab
    attn = jnp.dot(ctx_ref[...].reshape(BS, H), wo,
                   preferred_element_type=jnp.float32) + bo
    h1 = _layer_norm(x + attn, ln1g, ln1b)                             # f32

    # ---- feed-forward (bf16 matmuls over the slab, f32 elementwise)
    ff = jnp.dot(h1.astype(jnp.bfloat16), w1, preferred_element_type=jnp.float32) + b1
    ff = jax.nn.gelu(ff, approximate=True)
    ff = jnp.dot(ff.astype(jnp.bfloat16), w2, preferred_element_type=jnp.float32) + b2
    out = _layer_norm(h1 + ff, ln2g, ln2b)
    act_ref[...] = out                                                 # stays resident in VMEM

    # ---- classifier head: batched CLS gather + one matmul, last layer only
    @pl.when(layer == last)
    def _():
        cls = act_ref[pl.ds(0, B, stride=S), :]                        # (B, H): row 0 of each example
        logits = jnp.dot(cls.astype(jnp.bfloat16), fcw_ref[...],
                         preferred_element_type=jnp.float32) + fcb_ref[...]
        probs_ref[...] = _softmax_rows(logits, approx=False)           # exact division in the head


# ---------------------------------------------------------------------------
# Parameter init (deterministic, synthetic).  Weights pre-stacked per layer
# and pre-cast to bf16; fc padded to a lane-dense 128-wide output.
# ---------------------------------------------------------------------------
def init_params(key, vocab, max_pos, hidden, ffn, num_layers, num_labels):
    H, F, NL = hidden, ffn, num_layers
    Lpad = max(128, ((num_labels + 127) // 128) * 128)
    k = jax.random.split(key, 9)

    def nrm(kk, shape, scale=0.02):
        return jax.random.normal(kk, shape, jnp.float32) * scale

    wq = nrm(k[2], (NL, H, H))
    wk = nrm(k[3], (NL, H, H))
    wv = nrm(k[4], (NL, H, H))
    wqkv = jnp.concatenate([wq, wk, wv], axis=-1).astype(jnp.bfloat16)   # (NL, H, 3H)

    fc_w = jnp.zeros((H, Lpad), jnp.float32).at[:, :num_labels].set(
        nrm(k[8], (H, num_labels)))
    fc_b = jnp.full((1, Lpad), -1e9, jnp.float32).at[:, :num_labels].set(0.0)

    return {
        "word_emb": nrm(k[0], (vocab, H)).astype(jnp.bfloat16),
        "pos_emb": nrm(k[1], (max_pos, H)).astype(jnp.bfloat16),
        "emb_ln_g": jnp.ones((1, H), jnp.float32),
        "emb_ln_b": jnp.zeros((1, H), jnp.float32),
        "wqkv": wqkv,
        "bqkv": jnp.zeros((NL, 1, 3 * H), jnp.float32),
        "wo": nrm(k[5], (NL, H, H)).astype(jnp.bfloat16),
        "bo": jnp.zeros((NL, 1, H), jnp.float32),
        "ln1_g": jnp.ones((NL, 1, H), jnp.float32),
        "ln1_b": jnp.zeros((NL, 1, H), jnp.float32),
        "w1": nrm(k[6], (NL, H, F)).astype(jnp.bfloat16),
        "b1": jnp.zeros((NL, 1, F), jnp.float32),
        "w2": nrm(k[7], (NL, F, H)).astype(jnp.bfloat16),
        "b2": jnp.zeros((NL, 1, H), jnp.float32),
        "ln2_g": jnp.ones((NL, 1, H), jnp.float32),
        "ln2_b": jnp.zeros((NL, 1, H), jnp.float32),
        "fc_w": fc_w.astype(jnp.bfloat16),
        "fc_b": fc_b,
        "num_labels": num_labels,
    }


def _vmem_limit_bytes():
    # Generation-aware scoped-VMEM budget: ~16 MiB below physical capacity, capped at 100 MiB
    # (v5e/v6e 128 MiB -> 100 MiB; v7x 64 MiB -> 48 MiB).  Safe fallback if the query fails.
    try:
        cap = int(pltpu.get_tpu_info().vmem_capacity_bytes)
    except Exception:
        cap = 64 * 1024 * 1024
    return max(32 * 1024 * 1024, min(cap - 16 * 1024 * 1024, 100 * 1024 * 1024))


# ---------------------------------------------------------------------------
# Full forward: embeddings (JAX glue) -> fused Pallas encoder + head -> probs
# ---------------------------------------------------------------------------
def custom_model_forward(params, input_ids, attention_mask, num_heads):
    B, S = input_ids.shape
    H = params["word_emb"].shape[1]
    NL, _, F = params["w1"].shape
    Lpad = params["fc_w"].shape[1]

    # Embedding lookup + positions (gather kept in plain JAX); pre-LN sum in f32, flattened.
    x = (params["word_emb"][input_ids].astype(jnp.float32)
         + params["pos_emb"][:S][None, :, :].astype(jnp.float32)).reshape(B * S, H)
    # Additive attention mask precomputed once in the wrapper.
    mask_add = ((1.0 - attention_mask.astype(jnp.float32)) * -1e9).reshape(B, 1, S)

    def rep2(shape):
        return pl.BlockSpec(shape, lambda l: (0, 0))

    def rep3(shape):
        return pl.BlockSpec(shape, lambda l: (0, 0, 0))

    def per_layer(shape):
        return pl.BlockSpec((1,) + shape, lambda l: (l, 0, 0))

    grid_spec = pltpu.PrefetchScalarGridSpec(
        num_scalar_prefetch=0,
        grid=(NL,),
        in_specs=[
            rep3((B, 1, S)),                                     # additive attention mask
            pl.BlockSpec(memory_space=pl.ANY),                   # pre-LN embeddings (HBM, layer-0 DMA)
            per_layer((H, 3 * H)), per_layer((1, 3 * H)),        # wqkv, bqkv
            per_layer((H, H)), per_layer((1, H)),                # wo, bo
            per_layer((1, H)), per_layer((1, H)),                # ln1 g, b
            per_layer((H, F)), per_layer((1, F)),                # ffn w1, b1
            per_layer((F, H)), per_layer((1, H)),                # ffn w2, b2
            per_layer((1, H)), per_layer((1, H)),                # ln2 g, b
            rep2((1, H)), rep2((1, H)),                          # embedding LN g, b
            rep2((H, Lpad)), rep2((1, Lpad)),                    # fc w, b (padded to 128 lanes)
        ],
        out_specs=pl.BlockSpec((B, Lpad), lambda l: (0, 0)),
        scratch_shapes=[
            pltpu.VMEM((B * S, H), jnp.float32),                 # resident residual stream
            pltpu.VMEM((B, S, 3 * H), jnp.bfloat16),             # fused QKV (lane-dense store)
            pltpu.VMEM((B, S, H), jnp.bfloat16),                 # attention context assembly
            pltpu.SemaphoreType.DMA(()),                         # layer-0 embedding DMA
        ],
    )

    kernel = functools.partial(_fused_model_kernel, num_heads)
    probs_padded = pl.pallas_call(
        kernel,
        out_shape=jax.ShapeDtypeStruct((B, Lpad), jnp.float32),
        grid_spec=grid_spec,
        compiler_params=pltpu.CompilerParams(
            dimension_semantics=("arbitrary",),                  # layers are sequential
            vmem_limit_bytes=_vmem_limit_bytes()),
    )(mask_add, x,
      params["wqkv"], params["bqkv"], params["wo"], params["bo"],
      params["ln1_g"], params["ln1_b"],
      params["w1"], params["b1"], params["w2"], params["b2"],
      params["ln2_g"], params["ln2_b"],
      params["emb_ln_g"], params["emb_ln_b"],
      params["fc_w"], params["fc_b"])

    return probs_padded[:, :params["num_labels"]]                # (B, num_labels)


if __name__ == "__main__":
    B, S, H, F, NH, NL = 2, 8, 32, 64, 4, 2          # small synthetic backbone
    VOCAB, NUM_LABELS = 100, 26                      # 26 domain labels

    key = jax.random.PRNGKey(0)
    pkey, ikey = jax.random.split(key)
    params = init_params(pkey, VOCAB, S, H, F, NL, NUM_LABELS)

    input_ids = jax.random.randint(ikey, (B, S), 0, VOCAB, dtype=jnp.int32)
    attention_mask = jnp.ones((B, S), jnp.int32).at[1, 6:].set(0)   # pad last 2 of row 1

    probs = custom_model_forward(params, input_ids, attention_mask, NH)
    jax.block_until_ready(probs)

    assert probs.shape == (B, NUM_LABELS)
    assert bool(jnp.all(jnp.isfinite(probs)))
    assert bool(jnp.allclose(probs.sum(axis=-1), 1.0, atol=1e-3))
    print("KERNEL_OK")
</pallas_src>

<mosaic_0001>
module attributes {stable_mosaic.version = 11 : i64} {
  func.func @_fused_model_kernel(%arg0: i32, %arg1: memref<2x1x8xf32, #tpu.memory_space<vmem>>, %arg2: memref<16x32xf32, #tpu.memory_space<any>>, %arg3: memref<1x32x96xbf16, #tpu.memory_space<vmem>>, %arg4: memref<1x1x96xf32, #tpu.memory_space<vmem>>, %arg5: memref<1x32x32xbf16, #tpu.memory_space<vmem>>, %arg6: memref<1x1x32xf32, #tpu.memory_space<vmem>>, %arg7: memref<1x1x32xf32, #tpu.memory_space<vmem>>, %arg8: memref<1x1x32xf32, #tpu.memory_space<vmem>>, %arg9: memref<1x32x64xbf16, #tpu.memory_space<vmem>>, %arg10: memref<1x1x64xf32, #tpu.memory_space<vmem>>, %arg11: memref<1x64x32xbf16, #tpu.memory_space<vmem>>, %arg12: memref<1x1x32xf32, #tpu.memory_space<vmem>>, %arg13: memref<1x1x32xf32, #tpu.memory_space<vmem>>, %arg14: memref<1x1x32xf32, #tpu.memory_space<vmem>>, %arg15: memref<1x32xf32, #tpu.memory_space<vmem>>, %arg16: memref<1x32xf32, #tpu.memory_space<vmem>>, %arg17: memref<32x128xbf16, #tpu.memory_space<vmem>>, %arg18: memref<1x128xf32, #tpu.memory_space<vmem>>, %arg19: memref<2x128xf32, #tpu.memory_space<vmem>>, %arg20: memref<16x32xf32, #tpu.memory_space<vmem>>, %arg21: memref<2x8x96xbf16, #tpu.memory_space<vmem>>, %arg22: memref<2x8x32xbf16, #tpu.memory_space<vmem>>, %arg23: memref<!tpu.dma_semaphore, #tpu.memory_space<semaphore_mem>>) attributes {dimension_semantics = [#tpu.dimension_semantics<arbitrary>], iteration_bounds = array<i64: 2>, scalar_prefetch = 0 : i64, scratch_operands = 4 : i64, tpu.core_type = #tpu.core_type<tc>, window_params = [{pipeline_mode = #tpu.pipeline_mode<synchronous>, transform_indices = @transform_0, window_bounds = array<i64: 2, 1, 8>}, {}, {transform_indices = @transform_2, window_bounds = array<i64: 1, 32, 96>}, {transform_indices = @transform_3, window_bounds = array<i64: 1, 1, 96>}, {transform_indices = @transform_4, window_bounds = array<i64: 1, 32, 32>}, {transform_indices = @transform_5, window_bounds = array<i64: 1, 1, 32>}, {transform_indices = @transform_6, window_bounds = array<i64: 1, 1, 32>}, {transform_indices = @transform_7, window_bounds = array<i64: 1, 1, 32>}, {transform_indices = @transform_8, window_bounds = array<i64: 1, 32, 64>}, {transform_indices = @transform_9, window_bounds = array<i64: 1, 1, 64>}, {transform_indices = @transform_10, window_bounds = array<i64: 1, 64, 32>}, {transform_indices = @transform_11, window_bounds = array<i64: 1, 1, 32>}, {transform_indices = @transform_12, window_bounds = array<i64: 1, 1, 32>}, {transform_indices = @transform_13, window_bounds = array<i64: 1, 1, 32>}, {pipeline_mode = #tpu.pipeline_mode<synchronous>, transform_indices = @transform_14, window_bounds = array<i64: 1, 32>}, {pipeline_mode = #tpu.pipeline_mode<synchronous>, transform_indices = @transform_15, window_bounds = array<i64: 1, 32>}, {pipeline_mode = #tpu.pipeline_mode<synchronous>, transform_indices = @transform_16, window_bounds = array<i64: 32, 128>}, {pipeline_mode = #tpu.pipeline_mode<synchronous>, transform_indices = @transform_17, window_bounds = array<i64: 1, 128>}, {pipeline_mode = #tpu.pipeline_mode<synchronous>, transform_indices = @transform_18, window_bounds = array<i64: 2, 128>}]} {
    %c0_i32 = arith.constant 0 : i32
    %0 = arith.cmpi eq, %arg0, %c0_i32 : i32
    %1 = arith.extui %0 : i1 to i32
    %c0_i32_0 = arith.constant 0 : i32
    %2 = arith.cmpi ne, %1, %c0_i32_0 : i32
    scf.if %2 {
      tpu.enqueue_dma source(%arg2 : memref<16x32xf32, #tpu.memory_space<any>>) target(%arg20 : memref<16x32xf32, #tpu.memory_space<vmem>>) target_semaphore(%arg23 : memref<!tpu.dma_semaphore, #tpu.memory_space<semaphore_mem>>)
      tpu.wait_dma2 semaphore(%arg23 : memref<!tpu.dma_semaphore, #tpu.memory_space<semaphore_mem>>) src(%arg2 : memref<16x32xf32, #tpu.memory_space<any>>) dst(%arg20 : memref<16x32xf32, #tpu.memory_space<vmem>>)
      %c0_124 = arith.constant 0 : index
      %c0_125 = arith.constant 0 : index
      %200 = vector.load %arg20[%c0_124, %c0_125] : memref<16x32xf32, #tpu.memory_space<vmem>>, vector<16x32xf32>
      %c0_126 = arith.constant 0 : index
      %c0_127 = arith.constant 0 : index
      %201 = vector.load %arg15[%c0_126, %c0_127] : memref<1x32xf32, #tpu.memory_space<vmem>>, vector<1x32xf32>
      %c0_128 = arith.constant 0 : index
      %c0_129 = arith.constant 0 : index
      %202 = vector.load %arg16[%c0_128, %c0_129] : memref<1x32xf32, #tpu.memory_space<vmem>>, vector<1x32xf32>
      %cst_130 = arith.constant dense<0.000000e+00> : vector<16xf32>
      %203 = vector.multi_reduction <add>, %200, %cst_130 [1] : vector<16x32xf32> to vector<16xf32>
      %204 = vector.shape_cast %203 : vector<16xf32> to vector<16x1xf32>
      %cst_131 = arith.constant 3.200000e+01 : f32
      %205 = vector.broadcast %cst_131 : f32 to vector<16x1xf32>
      %206 = arith.divf %204, %205 : vector<16x1xf32>
      %207 = vector.broadcast %206 : vector<16x1xf32> to vector<16x32xf32>
      %208 = arith.subf %200, %207 : vector<16x32xf32>
      %209 = arith.mulf %208, %208 : vector<16x32xf32>
      %cst_132 = arith.constant dense<0.000000e+00> : vector<16xf32>
      %210 = vector.multi_reduction <add>, %209, %cst_132 [1] : vector<16x32xf32> to vector<16xf32>
      %211 = vector.shape_cast %210 : vector<16xf32> to vector<16x1xf32>
      %cst_133 = arith.constant 3.200000e+01 : f32
      %212 = vector.broadcast %cst_133 : f32 to vector<16x1xf32>
      %213 = arith.divf %211, %212 : vector<16x1xf32>
      %214 = vector.broadcast %206 : vector<16x1xf32> to vector<16x32xf32>
      %215 = arith.subf %200, %214 : vector<16x32xf32>
      %cst_134 = arith.constant 9.99999996E-13 : f32
      %216 = vector.broadcast %cst_134 : f32 to vector<16x1xf32>
      %217 = arith.addf %213, %216 : vector<16x1xf32>
      %218 = math.rsqrt %217 : vector<16x1xf32>
      %219 = vector.broadcast %218 : vector<16x1xf32> to vector<16x32xf32>
      %220 = arith.mulf %215, %219 : vector<16x32xf32>
      %221 = vector.broadcast %201 : vector<1x32xf32> to vector<16x32xf32>
      %222 = arith.mulf %220, %221 : vector<16x32xf32>
      %223 = vector.broadcast %202 : vector<1x32xf32> to vector<16x32xf32>
      %224 = arith.addf %222, %223 : vector<16x32xf32>
      %c0_135 = arith.constant 0 : index
      %c0_136 = arith.constant 0 : index
      %225 = vector.load %arg20[%c0_135, %c0_136] : memref<16x32xf32, #tpu.memory_space<vmem>>, vector<16x32xf32>
      tpu.vector_store %arg20[%c0_135, %c0_136], %224 {strides = array<i32>} : memref<16x32xf32, #tpu.memory_space<vmem>>, vector<16x32xf32>,
    } else {
    }
    %c0 = arith.constant 0 : index
    %c0_1 = arith.constant 0 : index
    %c0_2 = arith.constant 0 : index
    %3 = vector.load %arg3[%c0, %c0_1, %c0_2] : memref<1x32x96xbf16, #tpu.memory_space<vmem>>, vector<1x32x96xbf16>
    %4 = vector.shape_cast %3 : vector<1x32x96xbf16> to vector<32x96xbf16>
    %c0_3 = arith.constant 0 : index
    %c0_4 = arith.constant 0 : index
    %c0_5 = arith.constant 0 : index
    %5 = vector.load %arg4[%c0_3, %c0_4, %c0_5] : memref<1x1x96xf32, #tpu.memory_space<vmem>>, vector<1x1x96xf32>
    %6 = vector.shape_cast %5 : vector<1x1x96xf32> to vector<1x96xf32>
    %c0_6 = arith.constant 0 : index
    %c0_7 = arith.constant 0 : index
    %c0_8 = arith.constant 0 : index
    %7 = vector.load %arg5[%c0_6, %c0_7, %c0_8] : memref<1x32x32xbf16, #tpu.memory_space<vmem>>, vector<1x32x32xbf16>
    %8 = vector.shape_cast %7 : vector<1x32x32xbf16> to vector<32x32xbf16>
    %c0_9 = arith.constant 0 : index
    %c0_10 = arith.constant 0 : index
    %c0_11 = arith.constant 0 : index
    %9 = vector.load %arg6[%c0_9, %c0_10, %c0_11] : memref<1x1x32xf32, #tpu.memory_space<vmem>>, vector<1x1x32xf32>
    %10 = vector.shape_cast %9 : vector<1x1x32xf32> to vector<1x32xf32>
    %c0_12 = arith.constant 0 : index
    %c0_13 = arith.constant 0 : index
    %c0_14 = arith.constant 0 : index
    %11 = vector.load %arg7[%c0_12, %c0_13, %c0_14] : memref<1x1x32xf32, #tpu.memory_space<vmem>>, vector<1x1x32xf32>
    %12 = vector.shape_cast %11 : vector<1x1x32xf32> to vector<1x32xf32>
    %c0_15 = arith.constant 0 : index
    %c0_16 = arith.constant 0 : index
    %c0_17 = arith.constant 0 : index
    %13 = vector.load %arg8[%c0_15, %c0_16, %c0_17] : memref<1x1x32xf32, #tpu.memory_space<vmem>>, vector<1x1x32xf32>
    %14 = vector.shape_cast %13 : vector<1x1x32xf32> to vector<1x32xf32>
    %c0_18 = arith.constant 0 : index
    %c0_19 = arith.constant 0 : index
    %c0_20 = arith.constant 0 : index
    %15 = vector.load %arg9[%c0_18, %c0_19, %c0_20] : memref<1x32x64xbf16, #tpu.memory_space<vmem>>, vector<1x32x64xbf16>
    %16 = vector.shape_cast %15 : vector<1x32x64xbf16> to vector<32x64xbf16>
    %c0_21 = arith.constant 0 : index
    %c0_22 = arith.constant 0 : index
    %c0_23 = arith.constant 0 : index
    %17 = vector.load %arg10[%c0_21, %c0_22, %c0_23] : memref<1x1x64xf32, #tpu.memory_space<vmem>>, vector<1x1x64xf32>
    %18 = vector.shape_cast %17 : vector<1x1x64xf32> to vector<1x64xf32>
    %c0_24 = arith.constant 0 : index
    %c0_25 = arith.constant 0 : index
    %c0_26 = arith.constant 0 : index
    %19 = vector.load %arg11[%c0_24, %c0_25, %c0_26] : memref<1x64x32xbf16, #tpu.memory_space<vmem>>, vector<1x64x32xbf16>
    %20 = vector.shape_cast %19 : vector<1x64x32xbf16> to vector<64x32xbf16>
    %c0_27 = arith.constant 0 : index
    %c0_28 = arith.constant 0 : index
    %c0_29 = arith.constant 0 : index
    %21 = vector.load %arg12[%c0_27, %c0_28, %c0_29] : memref<1x1x32xf32, #tpu.memory_space<vmem>>, vector<1x1x32xf32>
    %22 = vector.shape_cast %21 : vector<1x1x32xf32> to vector<1x32xf32>
    %c0_30 = arith.constant 0 : index
    %c0_31 = arith.constant 0 : index
    %c0_32 = arith.constant 0 : index
    %23 = vector.load %arg13[%c0_30, %c0_31, %c0_32] : memref<1x1x32xf32, #tpu.memory_space<vmem>>, vector<1x1x32xf32>
    %24 = vector.shape_cast %23 : vector<1x1x32xf32> to vector<1x32xf32>
    %c0_33 = arith.constant 0 : index
    %c0_34 = arith.constant 0 : index
    %c0_35 = arith.constant 0 : index
    %25 = vector.load %arg14[%c0_33, %c0_34, %c0_35] : memref<1x1x32xf32, #tpu.memory_space<vmem>>, vector<1x1x32xf32>
    %26 = vector.shape_cast %25 : vector<1x1x32xf32> to vector<1x32xf32>
    %c0_36 = arith.constant 0 : index
    %c0_37 = arith.constant 0 : index
    %27 = vector.load %arg20[%c0_36, %c0_37] : memref<16x32xf32, #tpu.memory_space<vmem>>, vector<16x32xf32>
    %28 = arith.truncf %27 : vector<16x32xf32> to vector<16x32xbf16>
    %cst = arith.constant dense<0.000000e+00> : vector<16x96xf32>
    %29 = tpu.matmul %28, %4, %cst {dimension_numbers = #tpu.dot_dimension_numbers<[1], [0], [0], [1], [0, 0, 1, 1], [], []>} : vector<16x32xbf16>, vector<32x96xbf16>, vector<16x96xf32> -> vector<16x96xf32>
    %30 = vector.broadcast %6 : vector<1x96xf32> to vector<16x96xf32>
    %31 = arith.addf %29, %30 : vector<16x96xf32>
    %32 = arith.truncf %31 : vector<16x96xf32> to vector<16x96xbf16>
    %33 = vector.shape_cast %32 : vector<16x96xbf16> to vector<2x8x96xbf16>
    %c0_38 = arith.constant 0 : index
    %c0_39 = arith.constant 0 : index
    %c0_40 = arith.constant 0 : index
    %34 = vector.load %arg21[%c0_38, %c0_39, %c0_40] : memref<2x8x96xbf16, #tpu.memory_space<vmem>>, vector<2x8x96xbf16>
    tpu.vector_store %arg21[%c0_38, %c0_39, %c0_40], %33 {strides = array<i32>} : memref<2x8x96xbf16, #tpu.memory_space<vmem>>, vector<2x8x96xbf16>,
    %c0_41 = arith.constant 0 : index
    %c0_42 = arith.constant 0 : index
    %c0_43 = arith.constant 0 : index
    %35 = vector.load %arg1[%c0_41, %c0_42, %c0_43] : memref<2x1x8xf32, #tpu.memory_space<vmem>>, vector<2x1x8xf32>
    %c0_44 = arith.constant 0 : index
    %c0_45 = arith.constant 0 : index
    %c0_46 = arith.constant 0 : index
    %36 = vector.load %arg21[%c0_44, %c0_45, %c0_46] : memref<2x8x96xbf16, #tpu.memory_space<vmem>>, vector<2x8x8xbf16>
    %c0_47 = arith.constant 0 : index
    %c0_48 = arith.constant 0 : index
    %c32 = arith.constant 32 : index
    %37 = vector.load %arg21[%c0_47, %c0_48, %c32] : memref<2x8x96xbf16, #tpu.memory_space<vmem>>, vector<2x8x8xbf16>
    %c0_49 = arith.constant 0 : index
    %c0_50 = arith.constant 0 : index
    %c64 = arith.constant 64 : index
    %38 = vector.load %arg21[%c0_49, %c0_50, %c64] : memref<2x8x96xbf16, #tpu.memory_space<vmem>>, vector<2x8x8xbf16>
    "tpu.trace_start"() <{level = 10 : i32, message = "bqd,bkd->bqk"}> : () -> ()
    %cst_51 = arith.constant dense<0.000000e+00> : vector<2x8x8xf32>
    %39 = tpu.matmul %36, %37, %cst_51 {dimension_numbers = #tpu.dot_dimension_numbers<[2], [2], [1], [1], [0, 0, 0, 1, 1, 1], [0], [0]>} : vector<2x8x8xbf16>, vector<2x8x8xbf16>, vector<2x8x8xf32> -> vector<2x8x8xf32>
    "tpu.trace_stop"() : () -> ()
    %cst_52 = arith.constant 0.353553385 : f32
    %40 = vector.broadcast %cst_52 : f32 to vector<2x8x8xf32>
    %41 = arith.mulf %39, %40 : vector<2x8x8xf32>
    %42 = vector.broadcast %35 : vector<2x1x8xf32> to vector<2x8x8xf32>
    %43 = arith.addf %41, %42 : vector<2x8x8xf32>
    %cst_53 = arith.constant dense<0xFF800000> : vector<2x8xf32>
    %44 = vector.multi_reduction <maximumf>, %43, %cst_53 [2] : vector<2x8x8xf32> to vector<2x8xf32>
    %45 = vector.shape_cast %44 : vector<2x8xf32> to vector<2x8x1xf32>
    %46 = vector.broadcast %45 : vector<2x8x1xf32> to vector<2x8x8xf32>
    %47 = arith.subf %43, %46 : vector<2x8x8xf32>
    %48 = math.exp %47 : vector<2x8x8xf32>
    %cst_54 = arith.constant dense<0.000000e+00> : vector<2x8xf32>
    %49 = vector.multi_reduction <add>, %48, %cst_54 [2] : vector<2x8x8xf32> to vector<2x8xf32>
    %50 = vector.shape_cast %49 : vector<2x8xf32> to vector<2x8x1xf32>
    %51 = tpu.reciprocal %50 {approx = true} : vector<2x8x1xf32> -> vector<2x8x1xf32>
    %52 = vector.broadcast %51 : vector<2x8x1xf32> to vector<2x8x8xf32>
    %53 = arith.mulf %48, %52 : vector<2x8x8xf32>
    %54 = arith.truncf %53 : vector<2x8x8xf32> to vector<2x8x8xbf16>
    "tpu.trace_start"() <{level = 10 : i32, message = "bqk,bkd->bqd"}> : () -> ()
    %cst_55 = arith.constant dense<0.000000e+00> : vector<2x8x8xf32>
    %55 = tpu.matmul %54, %38, %cst_55 {dimension_numbers = #tpu.dot_dimension_numbers<[2], [1], [1], [2], [0, 0, 0, 1, 1, 2], [0], [0]>} : vector<2x8x8xbf16>, vector<2x8x8xbf16>, vector<2x8x8xf32> -> vector<2x8x8xf32>
    "tpu.trace_stop"() : () -> ()
    %56 = arith.truncf %55 : vector<2x8x8xf32> to vector<2x8x8xbf16>
    %c0_56 = arith.constant 0 : index
    %c0_57 = arith.constant 0 : index
    %c0_58 = arith.constant 0 : index
    %57 = vector.load %arg22[%c0_56, %c0_57, %c0_58] : memref<2x8x32xbf16, #tpu.memory_space<vmem>>, vector<2x8x8xbf16>
    tpu.vector_store %arg22[%c0_56, %c0_57, %c0_58], %56 {strides = array<i32>} : memref<2x8x32xbf16, #tpu.memory_space<vmem>>, vector<2x8x8xbf16>,
    %c0_59 = arith.constant 0 : index
    %c0_60 = arith.constant 0 : index
    %c8 = arith.constant 8 : index
    %58 = vector.load %arg21[%c0_59, %c0_60, %c8] : memref<2x8x96xbf16, #tpu.memory_space<vmem>>, vector<2x8x8xbf16>
    %c0_61 = arith.constant 0 : index
    %c0_62 = arith.constant 0 : index
    %c40 = arith.constant 40 : index
    %59 = vector.load %arg21[%c0_61, %c0_62, %c40] : memref<2x8x96xbf16, #tpu.memory_space<vmem>>, vector<2x8x8xbf16>
    %c0_63 = arith.constant 0 : index
    %c0_64 = arith.constant 0 : index
    %c72 = arith.constant 72 : index
    %60 = vector.load %arg21[%c0_63, %c0_64, %c72] : memref<2x8x96xbf16, #tpu.memory_space<vmem>>, vector<2x8x8xbf16>
    "tpu.trace_start"() <{level = 10 : i32, message = "bqd,bkd->bqk"}> : () -> ()
    %cst_65 = arith.constant dense<0.000000e+00> : vector<2x8x8xf32>
    %61 = tpu.matmul %58, %59, %cst_65 {dimension_numbers = #tpu.dot_dimension_numbers<[2], [2], [1], [1], [0, 0, 0, 1, 1, 1], [0], [0]>} : vector<2x8x8xbf16>, vector<2x8x8xbf16>, vector<2x8x8xf32> -> vector<2x8x8xf32>
    "tpu.trace_stop"() : () -> ()
    %cst_66 = arith.constant 0.353553385 : f32
    %62 = vector.broadcast %cst_66 : f32 to vector<2x8x8xf32>
    %63 = arith.mulf %61, %62 : vector<2x8x8xf32>
    %64 = vector.broadcast %35 : vector<2x1x8xf32> to vector<2x8x8xf32>
    %65 = arith.addf %63, %64 : vector<2x8x8xf32>
    %cst_67 = arith.constant dense<0xFF800000> : vector<2x8xf32>
    %66 = vector.multi_reduction <maximumf>, %65, %cst_67 [2] : vector<2x8x8xf32> to vector<2x8xf32>
    %67 = vector.shape_cast %66 : vector<2x8xf32> to vector<2x8x1xf32>
    %68 = vector.broadcast %67 : vector<2x8x1xf32> to vector<2x8x8xf32>
    %69 = arith.subf %65, %68 : vector<2x8x8xf32>
    %70 = math.exp %69 : vector<2x8x8xf32>
    %cst_68 = arith.constant dense<0.000000e+00> : vector<2x8xf32>
    %71 = vector.multi_reduction <add>, %70, %cst_68 [2] : vector<2x8x8xf32> to vector<2x8xf32>
    %72 = vector.shape_cast %71 : vector<2x8xf32> to vector<2x8x1xf32>
    %73 = tpu.reciprocal %72 {approx = true} : vector<2x8x1xf32> -> vector<2x8x1xf32>
    %74 = vector.broadcast %73 : vector<2x8x1xf32> to vector<2x8x8xf32>
    %75 = arith.mulf %70, %74 : vector<2x8x8xf32>
    %76 = arith.truncf %75 : vector<2x8x8xf32> to vector<2x8x8xbf16>
    "tpu.trace_start"() <{level = 10 : i32, message = "bqk,bkd->bqd"}> : () -> ()
    %cst_69 = arith.constant dense<0.000000e+00> : vector<2x8x8xf32>
    %77 = tpu.matmul %76, %60, %cst_69 {dimension_numbers = #tpu.dot_dimension_numbers<[2], [1], [1], [2], [0, 0, 0, 1, 1, 2], [0], [0]>} : vector<2x8x8xbf16>, vector<2x8x8xbf16>, vector<2x8x8xf32> -> vector<2x8x8xf32>
    "tpu.trace_stop"() : () -> ()
    %78 = arith.truncf %77 : vector<2x8x8xf32> to vector<2x8x8xbf16>
    %c0_70 = arith.constant 0 : index
    %c0_71 = arith.constant 0 : index
    %c8_72 = arith.constant 8 : index
    %79 = vector.load %arg22[%c0_70, %c0_71, %c8_72] : memref<2x8x32xbf16, #tpu.memory_space<vmem>>, vector<2x8x8xbf16>
    tpu.vector_store %arg22[%c0_70, %c0_71, %c8_72], %78 {strides = array<i32>} : memref<2x8x32xbf16, #tpu.memory_space<vmem>>, vector<2x8x8xbf16>,
    %c0_73 = arith.constant 0 : index
    %c0_74 = arith.constant 0 : index
    %c16 = arith.constant 16 : index
    %80 = vector.load %arg21[%c0_73, %c0_74, %c16] : memref<2x8x96xbf16, #tpu.memory_space<vmem>>, vector<2x8x8xbf16>
    %c0_75 = arith.constant 0 : index
    %c0_76 = arith.constant 0 : index
    %c48 = arith.constant 48 : index
    %81 = vector.load %arg21[%c0_75, %c0_76, %c48] : memref<2x8x96xbf16, #tpu.memory_space<vmem>>, vector<2x8x8xbf16>
    %c0_77 = arith.constant 0 : index
    %c0_78 = arith.constant 0 : index
    %c80 = arith.constant 80 : index
    %82 = vector.load %arg21[%c0_77, %c0_78, %c80] : memref<2x8x96xbf16, #tpu.memory_space<vmem>>, vector<2x8x8xbf16>
    "tpu.trace_start"() <{level = 10 : i32, message = "bqd,bkd->bqk"}> : () -> ()
    %cst_79 = arith.constant dense<0.000000e+00> : vector<2x8x8xf32>
    %83 = tpu.matmul %80, %81, %cst_79 {dimension_numbers = #tpu.dot_dimension_numbers<[2], [2], [1], [1], [0, 0, 0, 1, 1, 1], [0], [0]>} : vector<2x8x8xbf16>, vector<2x8x8xbf16>, vector<2x8x8xf32> -> vector<2x8x8xf32>
    "tpu.trace_stop"() : () -> ()
    %cst_80 = arith.constant 0.353553385 : f32
    %84 = vector.broadcast %cst_80 : f32 to vector<2x8x8xf32>
    %85 = arith.mulf %83, %84 : vector<2x8x8xf32>
    %86 = vector.broadcast %35 : vector<2x1x8xf32> to vector<2x8x8xf32>
    %87 = arith.addf %85, %86 : vector<2x8x8xf32>
    %cst_81 = arith.constant dense<0xFF800000> : vector<2x8xf32>
    %88 = vector.multi_reduction <maximumf>, %87, %cst_81 [2] : vector<2x8x8xf32> to vector<2x8xf32>
    %89 = vector.shape_cast %88 : vector<2x8xf32> to vector<2x8x1xf32>
    %90 = vector.broadcast %89 : vector<2x8x1xf32> to vector<2x8x8xf32>
    %91 = arith.subf %87, %90 : vector<2x8x8xf32>
    %92 = math.exp %91 : vector<2x8x8xf32>
    %cst_82 = arith.constant dense<0.000000e+00> : vector<2x8xf32>
    %93 = vector.multi_reduction <add>, %92, %cst_82 [2] : vector<2x8x8xf32> to vector<2x8xf32>
    %94 = vector.shape_cast %93 : vector<2x8xf32> to vector<2x8x1xf32>
    %95 = tpu.reciprocal %94 {approx = true} : vector<2x8x1xf32> -> vector<2x8x1xf32>
    %96 = vector.broadcast %95 : vector<2x8x1xf32> to vector<2x8x8xf32>
    %97 = arith.mulf %92, %96 : vector<2x8x8xf32>
    %98 = arith.truncf %97 : vector<2x8x8xf32> to vector<2x8x8xbf16>
    "tpu.trace_start"() <{level = 10 : i32, message = "bqk,bkd->bqd"}> : () -> ()
    %cst_83 = arith.constant dense<0.000000e+00> : vector<2x8x8xf32>
    %99 = tpu.matmul %98, %82, %cst_83 {dimension_numbers = #tpu.dot_dimension_numbers<[2], [1], [1], [2], [0, 0, 0, 1, 1, 2], [0], [0]>} : vector<2x8x8xbf16>, vector<2x8x8xbf16>, vector<2x8x8xf32> -> vector<2x8x8xf32>
    "tpu.trace_stop"() : () -> ()
    %100 = arith.truncf %99 : vector<2x8x8xf32> to vector<2x8x8xbf16>
    %c0_84 = arith.constant 0 : index
    %c0_85 = arith.constant 0 : index
    %c16_86 = arith.constant 16 : index
    %101 = vector.load %arg22[%c0_84, %c0_85, %c16_86] : memref<2x8x32xbf16, #tpu.memory_space<vmem>>, vector<2x8x8xbf16>
    tpu.vector_store %arg22[%c0_84, %c0_85, %c16_86], %100 {strides = array<i32>} : memref<2x8x32xbf16, #tpu.memory_space<vmem>>, vector<2x8x8xbf16>,
    %c0_87 = arith.constant 0 : index
    %c0_88 = arith.constant 0 : index
    %c24 = arith.constant 24 : index
    %102 = vector.load %arg21[%c0_87, %c0_88, %c24] : memref<2x8x96xbf16, #tpu.memory_space<vmem>>, vector<2x8x8xbf16>
    %c0_89 = arith.constant 0 : index
    %c0_90 = arith.constant 0 : index
    %c56 = arith.constant 56 : index
    %103 = vector.load %arg21[%c0_89, %c0_90, %c56] : memref<2x8x96xbf16, #tpu.memory_space<vmem>>, vector<2x8x8xbf16>
    %c0_91 = arith.constant 0 : index
    %c0_92 = arith.constant 0 : index
    %c88 = arith.constant 88 : index
    %104 = vector.load %arg21[%c0_91, %c0_92, %c88] : memref<2x8x96xbf16, #tpu.memory_space<vmem>>, vector<2x8x8xbf16>
    "tpu.trace_start"() <{level = 10 : i32, message = "bqd,bkd->bqk"}> : () -> ()
    %cst_93 = arith.constant dense<0.000000e+00> : vector<2x8x8xf32>
    %105 = tpu.matmul %102, %103, %cst_93 {dimension_numbers = #tpu.dot_dimension_numbers<[2], [2], [1], [1], [0, 0, 0, 1, 1, 1], [0], [0]>} : vector<2x8x8xbf16>, vector<2x8x8xbf16>, vector<2x8x8xf32> -> vector<2x8x8xf32>
    "tpu.trace_stop"() : () -> ()
    %cst_94 = arith.constant 0.353553385 : f32
    %106 = vector.broadcast %cst_94 : f32 to vector<2x8x8xf32>
    %107 = arith.mulf %105, %106 : vector<2x8x8xf32>
    %108 = vector.broadcast %35 : vector<2x1x8xf32> to vector<2x8x8xf32>
    %109 = arith.addf %107, %108 : vector<2x8x8xf32>
    %cst_95 = arith.constant dense<0xFF800000> : vector<2x8xf32>
    %110 = vector.multi_reduction <maximumf>, %109, %cst_95 [2] : vector<2x8x8xf32> to vector<2x8xf32>
    %111 = vector.shape_cast %110 : vector<2x8xf32> to vector<2x8x1xf32>
    %112 = vector.broadcast %111 : vector<2x8x1xf32> to vector<2x8x8xf32>
    %113 = arith.subf %109, %112 : vector<2x8x8xf32>
    %114 = math.exp %113 : vector<2x8x8xf32>
    %cst_96 = arith.constant dense<0.000000e+00> : vector<2x8xf32>
    %115 = vector.multi_reduction <add>, %114, %cst_96 [2] : vector<2x8x8xf32> to vector<2x8xf32>
    %116 = vector.shape_cast %115 : vector<2x8xf32> to vector<2x8x1xf32>
    %117 = tpu.reciprocal %116 {approx = true} : vector<2x8x1xf32> -> vector<2x8x1xf32>
    %118 = vector.broadcast %117 : vector<2x8x1xf32> to vector<2x8x8xf32>
    %119 = arith.mulf %114, %118 : vector<2x8x8xf32>
    %120 = arith.truncf %119 : vector<2x8x8xf32> to vector<2x8x8xbf16>
    "tpu.trace_start"() <{level = 10 : i32, message = "bqk,bkd->bqd"}> : () -> ()
    %cst_97 = arith.constant dense<0.000000e+00> : vector<2x8x8xf32>
    %121 = tpu.matmul %120, %104, %cst_97 {dimension_numbers = #tpu.dot_dimension_numbers<[2], [1], [1], [2], [0, 0, 0, 1, 1, 2], [0], [0]>} : vector<2x8x8xbf16>, vector<2x8x8xbf16>, vector<2x8x8xf32> -> vector<2x8x8xf32>
    "tpu.trace_stop"() : () -> ()
    %122 = arith.truncf %121 : vector<2x8x8xf32> to vector<2x8x8xbf16>
    %c0_98 = arith.constant 0 : index
    %c0_99 = arith.constant 0 : index
    %c24_100 = arith.constant 24 : index
    %123 = vector.load %arg22[%c0_98, %c0_99, %c24_100] : memref<2x8x32xbf16, #tpu.memory_space<vmem>>, vector<2x8x8xbf16>
    tpu.vector_store %arg22[%c0_98, %c0_99, %c24_100], %122 {strides = array<i32>} : memref<2x8x32xbf16, #tpu.memory_space<vmem>>, vector<2x8x8xbf16>,
    %c0_101 = arith.constant 0 : index
    %c0_102 = arith.constant 0 : index
    %c0_103 = arith.constant 0 : index
    %124 = vector.load %arg22[%c0_101, %c0_102, %c0_103] : memref<2x8x32xbf16, #tpu.memory_space<vmem>>, vector<2x8x32xbf16>
    %125 = vector.shape_cast %124 : vector<2x8x32xbf16> to vector<16x32xbf16>
    %cst_104 = arith.constant dense<0.000000e+00> : vector<16x32xf32>
    %126 = tpu.matmul %125, %8, %cst_104 {dimension_numbers = #tpu.dot_dimension_numbers<[1], [0], [0], [1], [0, 0, 1, 1], [], []>} : vector<16x32xbf16>, vector<32x32xbf16>, vector<16x32xf32> -> vector<16x32xf32>
    %127 = vector.broadcast %10 : vector<1x32xf32> to vector<16x32xf32>
    %128 = arith.addf %126, %127 : vector<16x32xf32>
    %129 = arith.addf %27, %128 : vector<16x32xf32>
    %cst_105 = arith.constant dense<0.000000e+00> : vector<16xf32>
    %130 = vector.multi_reduction <add>, %129, %cst_105 [1] : vector<16x32xf32> to vector<16xf32>
    %131 = vector.shape_cast %130 : vector<16xf32> to vector<16x1xf32>
    %cst_106 = arith.constant 3.200000e+01 : f32
    %132 = vector.broadcast %cst_106 : f32 to vector<16x1xf32>
    %133 = arith.divf %131, %132 : vector<16x1xf32>
    %134 = vector.broadcast %133 : vector<16x1xf32> to vector<16x32xf32>
    %135 = arith.subf %129, %134 : vector<16x32xf32>
    %136 = arith.mulf %135, %135 : vector<16x32xf32>
    %cst_107 = arith.constant dense<0.000000e+00> : vector<16xf32>
    %137 = vector.multi_reduction <add>, %136, %cst_107 [1] : vector<16x32xf32> to vector<16xf32>
    %138 = vector.shape_cast %137 : vector<16xf32> to vector<16x1xf32>
    %cst_108 = arith.constant 3.200000e+01 : f32
    %139 = vector.broadcast %cst_108 : f32 to vector<16x1xf32>
    %140 = arith.divf %138, %139 : vector<16x1xf32>
    %141 = vector.broadcast %133 : vector<16x1xf32> to vector<16x32xf32>
    %142 = arith.subf %129, %141 : vector<16x32xf32>
    %cst_109 = arith.constant 9.99999996E-13 : f32
    %143 = vector.broadcast %cst_109 : f32 to vector<16x1xf32>
    %144 = arith.addf %140, %143 : vector<16x1xf32>
    %145 = math.rsqrt %144 : vector<16x1xf32>
    %146 = vector.broadcast %145 : vector<16x1xf32> to vector<16x32xf32>
    %147 = arith.mulf %142, %146 : vector<16x32xf32>
    %148 = vector.broadcast %12 : vector<1x32xf32> to vector<16x32xf32>
    %149 = arith.mulf %147, %148 : vector<16x32xf32>
    %150 = vector.broadcast %14 : vector<1x32xf32> to vector<16x32xf32>
    %151 = arith.addf %149, %150 : vector<16x32xf32>
    %152 = arith.truncf %151 : vector<16x32xf32> to vector<16x32xbf16>
    %cst_110 = arith.constant dense<0.000000e+00> : vector<16x64xf32>
    %153 = tpu.matmul %152, %16, %cst_110 {dimension_numbers = #tpu.dot_dimension_numbers<[1], [0], [0], [1], [0, 0, 1, 1], [], []>} : vector<16x32xbf16>, vector<32x64xbf16>, vector<16x64xf32> -> vector<16x64xf32>
    %154 = vector.broadcast %18 : vector<1x64xf32> to vector<16x64xf32>
    %155 = arith.addf %153, %154 : vector<16x64xf32>
    %156 = arith.mulf %155, %155 : vector<16x64xf32>
    %157 = arith.mulf %155, %156 : vector<16x64xf32>
    %cst_111 = arith.constant 4.471500e-02 : f32
    %158 = vector.broadcast %cst_111 : f32 to vector<16x64xf32>
    %159 = arith.mulf %158, %157 : vector<16x64xf32>
    %160 = arith.addf %155, %159 : vector<16x64xf32>
    %cst_112 = arith.constant 0.797884583 : f32
    %161 = vector.broadcast %cst_112 : f32 to vector<16x64xf32>
    %162 = arith.mulf %161, %160 : vector<16x64xf32>
    %163 = math.tanh %162 : vector<16x64xf32>
    %cst_113 = arith.constant 1.000000e+00 : f32
    %164 = vector.broadcast %cst_113 : f32 to vector<16x64xf32>
    %165 = arith.addf %164, %163 : vector<16x64xf32>
    %cst_114 = arith.constant 5.000000e-01 : f32
    %166 = vector.broadcast %cst_114 : f32 to vector<16x64xf32>
    %167 = arith.mulf %166, %165 : vector<16x64xf32>
    %168 = arith.mulf %155, %167 : vector<16x64xf32>
    %169 = arith.truncf %168 : vector<16x64xf32> to vector<16x64xbf16>
    %cst_115 = arith.constant dense<0.000000e+00> : vector<16x32xf32>
    %170 = tpu.matmul %169, %20, %cst_115 {dimension_numbers = #tpu.dot_dimension_numbers<[1], [0], [0], [1], [0, 0, 1, 1], [], []>} : vector<16x64xbf16>, vector<64x32xbf16>, vector<16x32xf32> -> vector<16x32xf32>
    %171 = vector.broadcast %22 : vector<1x32xf32> to vector<16x32xf32>
    %172 = arith.addf %170, %171 : vector<16x32xf32>
    %173 = arith.addf %151, %172 : vector<16x32xf32>
    %cst_116 = arith.constant dense<0.000000e+00> : vector<16xf32>
    %174 = vector.multi_reduction <add>, %173, %cst_116 [1] : vector<16x32xf32> to vector<16xf32>
    %175 = vector.shape_cast %174 : vector<16xf32> to vector<16x1xf32>
    %cst_117 = arith.constant 3.200000e+01 : f32
    %176 = vector.broadcast %cst_117 : f32 to vector<16x1xf32>
    %177 = arith.divf %175, %176 : vector<16x1xf32>
    %178 = vector.broadcast %177 : vector<16x1xf32> to vector<16x32xf32>
    %179 = arith.subf %173, %178 : vector<16x32xf32>
    %180 = arith.mulf %179, %179 : vector<16x32xf32>
    %cst_118 = arith.constant dense<0.000000e+00> : vector<16xf32>
    %181 = vector.multi_reduction <add>, %180, %cst_118 [1] : vector<16x32xf32> to vector<16xf32>
    %182 = vector.shape_cast %181 : vector<16xf32> to vector<16x1xf32>
    %cst_119 = arith.constant 3.200000e+01 : f32
    %183 = vector.broadcast %cst_119 : f32 to vector<16x1xf32>
    %184 = arith.divf %182, %183 : vector<16x1xf32>
    %185 = vector.broadcast %177 : vector<16x1xf32> to vector<16x32xf32>
    %186 = arith.subf %173, %185 : vector<16x32xf32>
    %cst_120 = arith.constant 9.99999996E-13 : f32
    %187 = vector.broadcast %cst_120 : f32 to vector<16x1xf32>
    %188 = arith.addf %184, %187 : vector<16x1xf32>
    %189 = math.rsqrt %188 : vector<16x1xf32>
    %190 = vector.broadcast %189 : vector<16x1xf32> to vector<16x32xf32>
    %191 = arith.mulf %186, %190 : vector<16x32xf32>
    %192 = vector.broadcast %24 : vector<1x32xf32> to vector<16x32xf32>
    %193 = arith.mulf %191, %192 : vector<16x32xf32>
    %194 = vector.broadcast %26 : vector<1x32xf32> to vector<16x32xf32>
    %195 = arith.addf %193, %194 : vector<16x32xf32>
    %c0_121 = arith.constant 0 : index
    %c0_122 = arith.constant 0 : index
    %196 = vector.load %arg20[%c0_121, %c0_122] : memref<16x32xf32, #tpu.memory_space<vmem>>, vector<16x32xf32>
    tpu.vector_store %arg20[%c0_121, %c0_122], %195 {strides = array<i32>} : memref<16x32xf32, #tpu.memory_space<vmem>>, vector<16x32xf32>,
    %c1_i32 = arith.constant 1 : i32
    %197 = arith.cmpi eq, %arg0, %c1_i32 : i32
    %198 = arith.extui %197 : i1 to i32
    %c0_i32_123 = arith.constant 0 : i32
    %199 = arith.cmpi ne, %198, %c0_i32_123 : i32
    scf.if %199 {
      %c0_124 = arith.constant 0 : index
      %c0_125 = arith.constant 0 : index
      %200 = tpu.strided_load %arg20[%c0_124, %c0_125] {strides = array<i32: 8, 1>} : memref<16x32xf32, #tpu.memory_space<vmem>>, vector<2x32xf32>
      %201 = arith.truncf %200 : vector<2x32xf32> to vector<2x32xbf16>
      %c0_126 = arith.constant 0 : index
      %c0_127 = arith.constant 0 : index
      %202 = vector.load %arg17[%c0_126, %c0_127] : memref<32x128xbf16, #tpu.memory_space<vmem>>, vector<32x128xbf16>
      %cst_128 = arith.constant dense<0.000000e+00> : vector<2x128xf32>
      %203 = tpu.matmul %201, %202, %cst_128 {dimension_numbers = #tpu.dot_dimension_numbers<[1], [0], [0], [1], [0, 0, 1, 1], [], []>} : vector<2x32xbf16>, vector<32x128xbf16>, vector<2x128xf32> -> vector<2x128xf32>
      %c0_129 = arith.constant 0 : index
      %c0_130 = arith.constant 0 : index
      %204 = vector.load %arg18[%c0_129, %c0_130] : memref<1x128xf32, #tpu.memory_space<vmem>>, vector<1x128xf32>
      %205 = vector.broadcast %204 : vector<1x128xf32> to vector<2x128xf32>
      %206 = arith.addf %203, %205 : vector<2x128xf32>
      %cst_131 = arith.constant dense<0xFF800000> : vector<2xf32>
      %207 = vector.multi_reduction <maximumf>, %206, %cst_131 [1] : vector<2x128xf32> to vector<2xf32>
      %208 = vector.shape_cast %207 : vector<2xf32> to vector<2x1xf32>
      %209 = vector.broadcast %208 : vector<2x1xf32> to vector<2x128xf32>
      %210 = arith.subf %206, %209 : vector<2x128xf32>
      %211 = math.exp %210 : vector<2x128xf32>
      %cst_132 = arith.constant dense<0.000000e+00> : vector<2xf32>
      %212 = vector.multi_reduction <add>, %211, %cst_132 [1] : vector<2x128xf32> to vector<2xf32>
      %213 = vector.shape_cast %212 : vector<2xf32> to vector<2x1xf32>
      %214 = vector.broadcast %213 : vector<2x1xf32> to vector<2x128xf32>
      %215 = arith.divf %211, %214 : vector<2x128xf32>
      %c0_133 = arith.constant 0 : index
      %c0_134 = arith.constant 0 : index
      %216 = vector.load %arg19[%c0_133, %c0_134] : memref<2x128xf32, #tpu.memory_space<vmem>>, vector<2x128xf32>
      tpu.vector_store %arg19[%c0_133, %c0_134], %215 {strides = array<i32>} : memref<2x128xf32, #tpu.memory_space<vmem>>, vector<2x128xf32>,
    } else {
    }
    return
  }
  func.func @transform_0(%arg0: i32) -> (i32, i32, i32) {
    %c0_i32 = arith.constant 0 : i32
    %c0_i32_0 = arith.constant 0 : i32
    %c0_i32_1 = arith.constant 0 : i32
    %c0_i32_2 = arith.constant 0 : i32
    return %c0_i32, %c0_i32_0, %c0_i32_1 : i32, i32, i32
  }
  func.func @transform_2(%arg0: i32) -> (i32, i32, i32) {
    %c0_i32 = arith.constant 0 : i32
    %c0_i32_0 = arith.constant 0 : i32
    %c0_i32_1 = arith.constant 0 : i32
    return %arg0, %c0_i32, %c0_i32_0 : i32, i32, i32
  }
  func.func @transform_3(%arg0: i32) -> (i32, i32, i32) {
    %c0_i32 = arith.constant 0 : i32
    %c0_i32_0 = arith.constant 0 : i32
    %c0_i32_1 = arith.constant 0 : i32
    return %arg0, %c0_i32, %c0_i32_0 : i32, i32, i32
  }
  func.func @transform_4(%arg0: i32) -> (i32, i32, i32) {
    %c0_i32 = arith.constant 0 : i32
    %c0_i32_0 = arith.constant 0 : i32
    %c0_i32_1 = arith.constant 0 : i32
    return %arg0, %c0_i32, %c0_i32_0 : i32, i32, i32
  }
  func.func @transform_5(%arg0: i32) -> (i32, i32, i32) {
    %c0_i32 = arith.constant 0 : i32
    %c0_i32_0 = arith.constant 0 : i32
    %c0_i32_1 = arith.constant 0 : i32
    return %arg0, %c0_i32, %c0_i32_0 : i32, i32, i32
  }
  func.func @transform_6(%arg0: i32) -> (i32, i32, i32) {
    %c0_i32 = arith.constant 0 : i32
    %c0_i32_0 = arith.constant 0 : i32
    %c0_i32_1 = arith.constant 0 : i32
    return %arg0, %c0_i32, %c0_i32_0 : i32, i32, i32
  }
  func.func @transform_7(%arg0: i32) -> (i32, i32, i32) {
    %c0_i32 = arith.constant 0 : i32
    %c0_i32_0 = arith.constant 0 : i32
    %c0_i32_1 = arith.constant 0 : i32
    return %arg0, %c0_i32, %c0_i32_0 : i32, i32, i32
  }
  func.func @transform_8(%arg0: i32) -> (i32, i32, i32) {
    %c0_i32 = arith.constant 0 : i32
    %c0_i32_0 = arith.constant 0 : i32
    %c0_i32_1 = arith.constant 0 : i32
    return %arg0, %c0_i32, %c0_i32_0 : i32, i32, i32
  }
  func.func @transform_9(%arg0: i32) -> (i32, i32, i32) {
    %c0_i32 = arith.constant 0 : i32
    %c0_i32_0 = arith.constant 0 : i32
    %c0_i32_1 = arith.constant 0 : i32
    return %arg0, %c0_i32, %c0_i32_0 : i32, i32, i32
  }
  func.func @transform_10(%arg0: i32) -> (i32, i32, i32) {
    %c0_i32 = arith.constant 0 : i32
    %c0_i32_0 = arith.constant 0 : i32
    %c0_i32_1 = arith.constant 0 : i32
    return %arg0, %c0_i32, %c0_i32_0 : i32, i32, i32
  }
  func.func @transform_11(%arg0: i32) -> (i32, i32, i32) {
    %c0_i32 = arith.constant 0 : i32
    %c0_i32_0 = arith.constant 0 : i32
    %c0_i32_1 = arith.constant 0 : i32
    return %arg0, %c0_i32, %c0_i32_0 : i32, i32, i32
  }
  func.func @transform_12(%arg0: i32) -> (i32, i32, i32) {
    %c0_i32 = arith.constant 0 : i32
    %c0_i32_0 = arith.constant 0 : i32
    %c0_i32_1 = arith.constant 0 : i32
    return %arg0, %c0_i32, %c0_i32_0 : i32, i32, i32
  }
  func.func @transform_13(%arg0: i32) -> (i32, i32, i32) {
    %c0_i32 = arith.constant 0 : i32
    %c0_i32_0 = arith.constant 0 : i32
    %c0_i32_1 = arith.constant 0 : i32
    return %arg0, %c0_i32, %c0_i32_0 : i32, i32, i32
  }
  func.func @transform_14(%arg0: i32) -> (i32, i32) {
    %c0_i32 = arith.constant 0 : i32
    %c0_i32_0 = arith.constant 0 : i32
    %c0_i32_1 = arith.constant 0 : i32
    return %c0_i32, %c0_i32_0 : i32, i32
  }
  func.func @transform_15(%arg0: i32) -> (i32, i32) {
    %c0_i32 = arith.constant 0 : i32
    %c0_i32_0 = arith.constant 0 : i32
    %c0_i32_1 = arith.constant 0 : i32
    return %c0_i32, %c0_i32_0 : i32, i32
  }
  func.func @transform_16(%arg0: i32) -> (i32, i32) {
    %c0_i32 = arith.constant 0 : i32
    %c0_i32_0 = arith.constant 0 : i32
    %c0_i32_1 = arith.constant 0 : i32
    return %c0_i32, %c0_i32_0 : i32, i32
  }
  func.func @transform_17(%arg0: i32) -> (i32, i32) {
    %c0_i32 = arith.constant 0 : i32
    %c0_i32_0 = arith.constant 0 : i32
    %c0_i32_1 = arith.constant 0 : i32
    return %c0_i32, %c0_i32_0 : i32, i32
  }
  func.func @transform_18(%arg0: i32) -> (i32, i32) {
    %c0_i32 = arith.constant 0 : i32
    %c0_i32_0 = arith.constant 0 : i32
    %c0_i32_1 = arith.constant 0 : i32
    return %c0_i32, %c0_i32_0 : i32, i32
  }
}

</mosaic_0001>

<llo_original>
// kernel: tpu_custom_call.1
$region0: #{tpu_custom_call.1}
  #allocation0 [shape = 'u32[]', space=smem, size = 0x4, offset = 0x4, fixed_abs, tag = 'smem constant byte address 0x4 - core index']
  #allocation1 [shape = 'u32[72,128]{1,0:T(1,128)}', space=vmem, size = 0x9000, scoped, tag = 'internal scratch']
  #allocation2 [shape = 'f32[16,32]{1,0:T(8,128)}', space=vmem, size = 0x2000, scoped, tag = 'scratch operand']
  #allocation3 [shape = 'bf16[2,8,96]{2,1,0:T(8,128)(2,1)}', space=vmem, size = 0x1000, scoped, tag = 'scratch operand']
  #allocation4 [shape = 'bf16[2,8,32]{2,1,0:T(8,128)(2,1)}', space=vmem, size = 0x1000, scoped, tag = 'scratch operand']
  #allocation5 [shape = 's32[1]{0}', space=sflag, size = 0x4, scoped, tag = 'scratch operand']
  #allocation16 [shape = 's32[]', space=sflag, size = 0x4, offset = 0, fixed_abs, tag = 'sflag constant byte address 0x0 - dummy sync flag']
  #allocation17 [shape = 's32[]', space=sflag, size = 0x4, offset = 0, fixed_abs, tag = 'sflag constant byte address 0x0 - dummy sync flag']
  #allocation18 [shape = 'u32[]', space=smem, size = 0x4, offset = 0x44, fixed_abs, tag = 'smem constant byte address 0x44 - assertion arg 0']
  #allocation19 [shape = 'u32[]', space=smem, size = 0x4, offset = 0x48, fixed_abs, tag = 'smem constant byte address 0x48 - assertion arg 1']
  %s0 = inlined_call_operand.hbm [shape: f32[2,1,8], index: 0, kind: input, shape index: {}]
  %s1 = inlined_call_operand.hbm [shape: f32[16,32], index: 1, kind: input, shape index: {}]
  %s2 = inlined_call_operand.vmem [shape: bf16[2,32,96], index: 2, kind: input, shape index: {}]
  %s3 = inlined_call_operand.hbm [shape: f32[2,1,96], index: 3, kind: input, shape index: {}]
  %s4 = inlined_call_operand.vmem [shape: bf16[2,32,32], index: 4, kind: input, shape index: {}]
  %s5 = inlined_call_operand.vmem [shape: f32[2,1,32], index: 5, kind: input, shape index: {}]
  %s6 = inlined_call_operand.vmem [shape: f32[2,1,32], index: 6, kind: input, shape index: {}]
  %s7 = inlined_call_operand.hbm [shape: f32[2,1,32], index: 7, kind: input, shape index: {}]
  %s8 = inlined_call_operand.vmem [shape: bf16[2,32,64], index: 8, kind: input, shape index: {}]
  %s9 = inlined_call_operand.vmem [shape: f32[2,1,64], index: 9, kind: input, shape index: {}]
  %s10 = inlined_call_operand.vmem [shape: bf16[2,64,32], index: 10, kind: input, shape index: {}]
  %s11 = inlined_call_operand.vmem [shape: f32[2,1,32], index: 11, kind: input, shape index: {}]
  %s12 = inlined_call_operand.vmem [shape: f32[2,1,32], index: 12, kind: input, shape index: {}]
  %s13 = inlined_call_operand.hbm [shape: f32[2,1,32], index: 13, kind: input, shape index: {}]
  %s14 = inlined_call_operand.vmem [shape: f32[1,32], index: 14, kind: input, shape index: {}]
  %s15 = inlined_call_operand.vmem [shape: f32[1,32], index: 15, kind: input, shape index: {}]
  %s16 = inlined_call_operand.hbm [shape: bf16[32,128], index: 16, kind: input, shape index: {}]
  %s17 = inlined_call_operand.vmem [shape: f32[1,128], index: 17, kind: input, shape index: {}]
  %s18 = inlined_call_operand.hbm [shape: f32[2,128], index: 18, kind: output, shape index: {}]
  %s19 = sld [smem:[#allocation0]]
  $region133: #{tpu_custom_call.1} parent=0
    _
  %s21 = ssub.s32 1, %s19
  %s22 = scalar_select 0, %s21, %s19
  $region1: #{tpu_custom_call.1} parent=0
    #allocation6 [shape = 'u8[1024]{0}', space=vmem, size = 0x400, scoped, tag = 'input window, operand 0, single buffered']
    #allocation7 [shape = 's32[2]{0}', space=sflag, size = 0x8, scoped, tag = 'scoped memory for tpu_custom_call.1']
    #allocation8 [shape = 's32[2]{0}', space=sflag, size = 0x8, scoped, tag = 'scoped memory for tpu_custom_call.1']
    #allocation9 [shape = 'u8[1024]{0}', space=vmem, size = 0x400, scoped, tag = 'input window, operand 3']
    #allocation10 [shape = 's32[2]{0}', space=sflag, size = 0x8, scoped, tag = 'scoped memory for tpu_custom_call.1']
    #allocation11 [shape = 'u8[1024]{0}', space=vmem, size = 0x400, scoped, tag = 'input window, operand 7']
    #allocation12 [shape = 'u8[1024]{0}', space=vmem, size = 0x400, scoped, tag = 'input window, operand 13']
    #allocation13 [shape = 's32[2]{0}', space=sflag, size = 0x8, scoped, tag = 'scoped memory for tpu_custom_call.1']
    #allocation14 [shape = 'u8[8192]{0}', space=vmem, size = 0x2000, scoped, tag = 'input window, operand 16, single buffered']
    #allocation15 [shape = 'u8[1024]{0}', space=vmem, size = 0x400, scoped, tag = 'output window, operand 0, single buffered']
    %23 = vsyncpa [#allocation7], 0
    %24 = vsyncpa [#allocation10], 0
    %s25 = scalar_lea.sflag [#allocation10], 1
    %26 = vsyncpa %s25, 0
    %27 = vsyncpa [#allocation13], 0
    %s28 = scalar_lea.sflag [#allocation13], 1
    %29 = vsyncpa %s28, 0
    %30 = vsyncpa [#allocation8], 0
    loop: start=0, step=1, limit=4
    $region2: #{tpu_custom_call.1} parent=1 // loop_pre_header
      _
    $region3: #{tpu_custom_call.1} parent=1 // loop_header
      %s32 = sphi 0, %s36
      %p33 = scmp.ge.s32.totalorder %s32, 4
      %s40 = sphi 0, %s40
      %s42 = sphi 0, %s40
      %s43 = sphi 0, %s42
      %s57 = sphi 0, %s43
      %s63 = sphi 0, %s65
      %s66 = sphi 0, %s63
      %s67 = sphi 0, %s66
      %s83 = sphi 0, %s67
      %s89 = sphi 0, %s91
      %s92 = sphi 0, %s89
      %s93 = sphi 0, %s92
      %s109 = sphi 0, %s93
      %s115 = sphi 0, %s117
      %s118 = sphi 0, %s115
      %s119 = sphi 0, %s118
      %s135 = sphi 0, %s119
      %s141 = sphi 0, %s143
      %s144 = sphi 0, %s141
      %s145 = sphi 0, %s144
      %s161 = sphi 0, %s145
      %s167 = sphi 0, %s169
      %s170 = sphi 0, %s167
      %s171 = sphi 0, %s170
      %s187 = sphi 0, %s171
      %s193 = sphi 0, %s195
      %s196 = sphi 0, %s193
      %s197 = sphi 0, %s196
      %s213 = sphi 0, %s197
      %s219 = sphi 0, %s221
      %s222 = sphi 0, %s219
      %s223 = sphi 0, %s222
      %s239 = sphi 0, %s223
      %s245 = sphi 0, %s247
      %s248 = sphi 0, %s245
      %s249 = sphi 0, %s248
      %s265 = sphi 0, %s249
      %s271 = sphi 0, %s273
      %s274 = sphi 0, %s271
      %s275 = sphi 0, %s274
      %s291 = sphi 0, %s275
      %s297 = sphi 0, %s299
      %s300 = sphi 0, %s297
      %s301 = sphi 0, %s300
      %s317 = sphi 0, %s301
      %s323 = sphi 0, %s325
      %s326 = sphi 0, %s323
      %s327 = sphi 0, %s326
      %s343 = sphi 0, %s327
      %s349 = sphi 0, %s351
      %s352 = sphi 0, %s349
      %s353 = sphi 0, %s352
      %s369 = sphi 0, %s353
      %s373 = sphi 0, %s373
      %s375 = sphi 0, %s373
      %s376 = sphi 0, %s375
      %s390 = sphi 0, %s376
      %s394 = sphi 0, %s394
      %s396 = sphi 0, %s394
      %s397 = sphi 0, %s396
      %s411 = sphi 0, %s397
      %s415 = sphi 0, %s415
      %s417 = sphi 0, %s415
      %s418 = sphi 0, %s417
      %s432 = sphi 0, %s418
      %s436 = sphi 0, %s436
      %s438 = sphi 0, %s436
      %s439 = sphi 0, %s438
      %s453 = sphi 0, %s439
      %s457 = sphi 0, %s457
      %s459 = sphi 0, %s457
      %s460 = sphi 0, %s459
      %s474 = sphi 0, %s460
    $region4: #{tpu_custom_call.1} parent=1 // loop_header_branch
      %35 = sbr.rel (%p33) target = $region8
    $region5: #{tpu_custom_call.1} parent=1 // loop_body
      %s37 = ssub.s32 %s32, 1
      %s38 = ssub.s32 %s32, 2
      %s39 = sadd.s32 %s32, 1
      %s41 = sadd.s32 %s40, 1
      %p44 = scmp.eq.s32.totalorder %s32, 1
      %p45 = scmp.ne.s32.totalorder %s40, %s42
      %p46 = scmp.eq.s32.totalorder %s32, 0
      %p47 = por %p45, %p46
      %p48 = scmp.ne.s32.totalorder %s40, %s42
      %p49 = scmp.eq.s32.totalorder %s37, 1
      %p50 = por %p48, %p49
      %p51 = scmp.ne.s32.totalorder %s42, %s43
      %p52 = scmp.eq.s32.totalorder %s37, 0
      %p53 = por %p51, %p52
      %p54 = scmp.ne.s32.totalorder %s42, %s43
      %p55 = scmp.eq.s32.totalorder %s38, 1
      %p56 = por %p54, %p55
      %p58 = scmp.ne.s32.totalorder %s43, %s57
      %p59 = scmp.eq.s32.totalorder %s38, 0
      %p60 = por %p58, %p59
      %s61 = ssub.s32 %s32, %s39
      %p62 = scmp.eq.s32.totalorder %s61, 0
      %s64 = sadd.s32 %s63, 1
      %s65 = scalar_select %p62, %s63, %s64
      %p68 = pneg %p62
      %p69 = scmp.eq.s32.totalorder %s32, 1
      %p70 = por %p68, %p69
      %p71 = scmp.ne.s32.totalorder %s63, %s66
      %p72 = scmp.eq.s32.totalorder %s32, 0
      %p73 = por %p71, %p72
      %p74 = scmp.ne.s32.totalorder %s63, %s66
      %p75 = scmp.eq.s32.totalorder %s37, 1
      %p76 = por %p74, %p75
      %p77 = scmp.ne.s32.totalorder %s66, %s67
      %p78 = scmp.eq.s32.totalorder %s37, 0
      %p79 = por %p77, %p78
      %p80 = scmp.ne.s32.totalorder %s66, %s67
      %p81 = scmp.eq.s32.totalorder %s38, 1
      %p82 = por %p80, %p81
      %p84 = scmp.ne.s32.totalorder %s67, %s83
      %p85 = scmp.eq.s32.totalorder %s38, 0
      %p86 = por %p84, %p85
      %s87 = ssub.s32 %s32, %s39
      %p88 = scmp.eq.s32.totalorder %s87, 0
      %s90 = sadd.s32 %s89, 1
      %s91 = scalar_select %p88, %s89, %s90
      %p94 = pneg %p88
      %p95 = scmp.eq.s32.totalorder %s32, 1
      %p96 = por %p94, %p95
      %p97 = scmp.ne.s32.totalorder %s89, %s92
      %p98 = scmp.eq.s32.totalorder %s32, 0
      %p99 = por %p97, %p98
      %p100 = scmp.ne.s32.totalorder %s89, %s92
      %p101 = scmp.eq.s32.totalorder %s37, 1
      %p102 = por %p100, %p101
      %p103 = scmp.ne.s32.totalorder %s92, %s93
      %p104 = scmp.eq.s32.totalorder %s37, 0
      %p105 = por %p103, %p104
      %p106 = scmp.ne.s32.totalorder %s92, %s93
      %p107 = scmp.eq.s32.totalorder %s38, 1
      %p108 = por %p106, %p107
      %p110 = scmp.ne.s32.totalorder %s93, %s109
      %p111 = scmp.eq.s32.totalorder %s38, 0
      %p112 = por %p110, %p111
      %s113 = ssub.s32 %s32, %s39
      %p114 = scmp.eq.s32.totalorder %s113, 0
      %s116 = sadd.s32 %s115, 1
      %s117 = scalar_select %p114, %s115, %s116
      %p120 = pneg %p114
      %p121 = scmp.eq.s32.totalorder %s32, 1
      %p122 = por %p120, %p121
      %p123 = scmp.ne.s32.totalorder %s115, %s118
      %p124 = scmp.eq.s32.totalorder %s32, 0
      %p125 = por %p123, %p124
      %p126 = scmp.ne.s32.totalorder %s115, %s118
      %p127 = scmp.eq.s32.totalorder %s37, 1
      %p128 = por %p126, %p127
      %p129 = scmp.ne.s32.totalorder %s118, %s119
      %p130 = scmp.eq.s32.totalorder %s37, 0
      %p131 = por %p129, %p130
      %p132 = scmp.ne.s32.totalorder %s118, %s119
      %p133 = scmp.eq.s32.totalorder %s38, 1
      %p134 = por %p132, %p133
      %p136 = scmp.ne.s32.totalorder %s119, %s135
      %p137 = scmp.eq.s32.totalorder %s38, 0
      %p138 = por %p136, %p137
      %s139 = ssub.s32 %s32, %s39
      %p140 = scmp.eq.s32.totalorder %s139, 0
      %s142 = sadd.s32 %s141, 1
      %s143 = scalar_select %p140, %s141, %s142
      %p146 = pneg %p140
      %p147 = scmp.eq.s32.totalorder %s32, 1
      %p148 = por %p146, %p147
      %p149 = scmp.ne.s32.totalorder %s141, %s144
      %p150 = scmp.eq.s32.totalorder %s32, 0
      %p151 = por %p149, %p150
      %p152 = scmp.ne.s32.totalorder %s141, %s144
      %p153 = scmp.eq.s32.totalorder %s37, 1
      %p154 = por %p152, %p153
      %p155 = scmp.ne.s32.totalorder %s144, %s145
      %p156 = scmp.eq.s32.totalorder %s37, 0
      %p157 = por %p155, %p156
      %p158 = scmp.ne.s32.totalorder %s144, %s145
      %p159 = scmp.eq.s32.totalorder %s38, 1
      %p160 = por %p158, %p159
      %p162 = scmp.ne.s32.totalorder %s145, %s161
      %p163 = scmp.eq.s32.totalorder %s38, 0
      %p164 = por %p162, %p163
      %s165 = ssub.s32 %s32, %s39
      %p166 = scmp.eq.s32.totalorder %s165, 0
      %s168 = sadd.s32 %s167, 1
      %s169 = scalar_select %p166, %s167, %s168
      %p172 = pneg %p166
      %p173 = scmp.eq.s32.totalorder %s32, 1
      %p174 = por %p172, %p173
      %p175 = scmp.ne.s32.totalorder %s167, %s170
      %p176 = scmp.eq.s32.totalorder %s32, 0
      %p177 = por %p175, %p176
      %p178 = scmp.ne.s32.totalorder %s167, %s170
      %p179 = scmp.eq.s32.totalorder %s37, 1
      %p180 = por %p178, %p179
      %p181 = scmp.ne.s32.totalorder %s170, %s171
      %p182 = scmp.eq.s32.totalorder %s37, 0
      %p183 = por %p181, %p182
      %p184 = scmp.ne.s32.totalorder %s170, %s171
      %p185 = scmp.eq.s32.totalorder %s38, 1
      %p186 = por %p184, %p185
      %p188 = scmp.ne.s32.totalorder %s171, %s187
      %p189 = scmp.eq.s32.totalorder %s38, 0
      %p190 = por %p188, %p189
      %s191 = ssub.s32 %s32, %s39
      %p192 = scmp.eq.s32.totalorder %s191, 0
      %s194 = sadd.s32 %s193, 1
      %s195 = scalar_select %p192, %s193, %s194
      %p198 = pneg %p192
      %p199 = scmp.eq.s32.totalorder %s32, 1
      %p200 = por %p198, %p199
      %p201 = scmp.ne.s32.totalorder %s193, %s196
      %p202 = scmp.eq.s32.totalorder %s32, 0
      %p203 = por %p201, %p202
      %p204 = scmp.ne.s32.totalorder %s193, %s196
      %p205 = scmp.eq.s32.totalorder %s37, 1
      %p206 = por %p204, %p205
      %p207 = scmp.ne.s32.totalorder %s196, %s197
      %p208 = scmp.eq.s32.totalorder %s37, 0
      %p209 = por %p207, %p208
      %p210 = scmp.ne.s32.totalorder %s196, %s197
      %p211 = scmp.eq.s32.totalorder %s38, 1
      %p212 = por %p210, %p211
      %p214 = scmp.ne.s32.totalorder %s197, %s213
      %p215 = scmp.eq.s32.totalorder %s38, 0
      %p216 = por %p214, %p215
      %s217 = ssub.s32 %s32, %s39
      %p218 = scmp.eq.s32.totalorder %s217, 0
      %s220 = sadd.s32 %s219, 1
      %s221 = scalar_select %p218, %s219, %s220
      %p224 = pneg %p218
      %p225 = scmp.eq.s32.totalorder %s32, 1
      %p226 = por %p224, %p225
      %p227 = scmp.ne.s32.totalorder %s219, %s222
      %p228 = scmp.eq.s32.totalorder %s32, 0
      %p229 = por %p227, %p228
      %p230 = scmp.ne.s32.totalorder %s219, %s222
      %p231 = scmp.eq.s32.totalorder %s37, 1
      %p232 = por %p230, %p231
      %p233 = scmp.ne.s32.totalorder %s222, %s223
      %p234 = scmp.eq.s32.totalorder %s37, 0
      %p235 = por %p233, %p234
      %p236 = scmp.ne.s32.totalorder %s222, %s223
      %p237 = scmp.eq.s32.totalorder %s38, 1
      %p238 = por %p236, %p237
      %p240 = scmp.ne.s32.totalorder %s223, %s239
      %p241 = scmp.eq.s32.totalorder %s38, 0
      %p242 = por %p240, %p241
      %s243 = ssub.s32 %s32, %s39
      %p244 = scmp.eq.s32.totalorder %s243, 0
      %s246 = sadd.s32 %s245, 1
      %s247 = scalar_select %p244, %s245, %s246
      %p250 = pneg %p244
      %p251 = scmp.eq.s32.totalorder %s32, 1
      %p252 = por %p250, %p251
      %p253 = scmp.ne.s32.totalorder %s245, %s248
      %p254 = scmp.eq.s32.totalorder %s32, 0
      %p255 = por %p253, %p254
      %p256 = scmp.ne.s32.totalorder %s245, %s248
      %p257 = scmp.eq.s32.totalorder %s37, 1
      %p258 = por %p256, %p257
      %p259 = scmp.ne.s32.totalorder %s248, %s249
      %p260 = scmp.eq.s32.totalorder %s37, 0
      %p261 = por %p259, %p260
      %p262 = scmp.ne.s32.totalorder %s248, %s249
      %p263 = scmp.eq.s32.totalorder %s38, 1
      %p264 = por %p262, %p263
      %p266 = scmp.ne.s32.totalorder %s249, %s265
      %p267 = scmp.eq.s32.totalorder %s38, 0
      %p268 = por %p266, %p267
      %s269 = ssub.s32 %s32, %s39
      %p270 = scmp.eq.s32.totalorder %s269, 0
      %s272 = sadd.s32 %s271, 1
      %s273 = scalar_select %p270, %s271, %s272
      %p276 = pneg %p270
      %p277 = scmp.eq.s32.totalorder %s32, 1
      %p278 = por %p276, %p277
      %p279 = scmp.ne.s32.totalorder %s271, %s274
      %p280 = scmp.eq.s32.totalorder %s32, 0
      %p281 = por %p279, %p280
      %p282 = scmp.ne.s32.totalorder %s271, %s274
      %p283 = scmp.eq.s32.totalorder %s37, 1
      %p284 = por %p282, %p283
      %p285 = scmp.ne.s32.totalorder %s274, %s275
      %p286 = scmp.eq.s32.totalorder %s37, 0
      %p287 = por %p285, %p286
      %p288 = scmp.ne.s32.totalorder %s274, %s275
      %p289 = scmp.eq.s32.totalorder %s38, 1
      %p290 = por %p288, %p289
      %p292 = scmp.ne.s32.totalorder %s275, %s291
      %p293 = scmp.eq.s32.totalorder %s38, 0
      %p294 = por %p292, %p293
      %s295 = ssub.s32 %s32, %s39
      %p296 = scmp.eq.s32.totalorder %s295, 0
      %s298 = sadd.s32 %s297, 1
      %s299 = scalar_select %p296, %s297, %s298
      %p302 = pneg %p296
      %p303 = scmp.eq.s32.totalorder %s32, 1
      %p304 = por %p302, %p303
      %p305 = scmp.ne.s32.totalorder %s297, %s300
      %p306 = scmp.eq.s32.totalorder %s32, 0
      %p307 = por %p305, %p306
      %p308 = scmp.ne.s32.totalorder %s297, %s300
      %p309 = scmp.eq.s32.totalorder %s37, 1
      %p310 = por %p308, %p309
      %p311 = scmp.ne.s32.totalorder %s300, %s301
      %p312 = scmp.eq.s32.totalorder %s37, 0
      %p313 = por %p311, %p312
      %p314 = scmp.ne.s32.totalorder %s300, %s301
      %p315 = scmp.eq.s32.totalorder %s38, 1
      %p316 = por %p314, %p315
      %p318 = scmp.ne.s32.totalorder %s301, %s317
      %p319 = scmp.eq.s32.totalorder %s38, 0
      %p320 = por %p318, %p319
      %s321 = ssub.s32 %s32, %s39
      %p322 = scmp.eq.s32.totalorder %s321, 0
      %s324 = sadd.s32 %s323, 1
      %s325 = scalar_select %p322, %s323, %s324
      %p328 = pneg %p322
      %p329 = scmp.eq.s32.totalorder %s32, 1
      %p330 = por %p328, %p329
      %p331 = scmp.ne.s32.totalorder %s323, %s326
      %p332 = scmp.eq.s32.totalorder %s32, 0
      %p333 = por %p331, %p332
      %p334 = scmp.ne.s32.totalorder %s323, %s326
      %p335 = scmp.eq.s32.totalorder %s37, 1
      %p336 = por %p334, %p335
      %p337 = scmp.ne.s32.totalorder %s326, %s327
      %p338 = scmp.eq.s32.totalorder %s37, 0
      %p339 = por %p337, %p338
      %p340 = scmp.ne.s32.totalorder %s326, %s327
      %p341 = scmp.eq.s32.totalorder %s38, 1
      %p342 = por %p340, %p341
      %p344 = scmp.ne.s32.totalorder %s327, %s343
      %p345 = scmp.eq.s32.totalorder %s38, 0
      %p346 = por %p344, %p345
      %s347 = ssub.s32 %s32, %s39
      %p348 = scmp.eq.s32.totalorder %s347, 0
      %s350 = sadd.s32 %s349, 1
      %s351 = scalar_select %p348, %s349, %s350
      %p354 = pneg %p348
      %p355 = scmp.eq.s32.totalorder %s32, 1
      %p356 = por %p354, %p355
      %p357 = scmp.ne.s32.totalorder %s349, %s352
      %p358 = scmp.eq.s32.totalorder %s32, 0
      %p359 = por %p357, %p358
      %p360 = scmp.ne.s32.totalorder %s349, %s352
      %p361 = scmp.eq.s32.totalorder %s37, 1
      %p362 = por %p360, %p361
      %p363 = scmp.ne.s32.totalorder %s352, %s353
      %p364 = scmp.eq.s32.totalorder %s37, 0
      %p365 = por %p363, %p364
      %p366 = scmp.ne.s32.totalorder %s352, %s353
      %p367 = scmp.eq.s32.totalorder %s38, 1
      %p368 = por %p366, %p367
      %p370 = scmp.ne.s32.totalorder %s353, %s369
      %p371 = scmp.eq.s32.totalorder %s38, 0
      %p372 = por %p370, %p371
      %s374 = sadd.s32 %s373, 1
      %p377 = scmp.eq.s32.totalorder %s32, 1
      %p378 = scmp.ne.s32.totalorder %s373, %s375
      %p379 = scmp.eq.s32.totalorder %s32, 0
      %p380 = por %p378, %p379
      %p381 = scmp.ne.s32.totalorder %s373, %s375
      %p382 = scmp.eq.s32.totalorder %s37, 1
      %p383 = por %p381, %p382
      %p384 = scmp.ne.s32.totalorder %s375, %s376
      %p385 = scmp.eq.s32.totalorder %s37, 0
      %p386 = por %p384, %p385
      %p387 = scmp.ne.s32.totalorder %s375, %s376
      %p388 = scmp.eq.s32.totalorder %s38, 1
      %p389 = por %p387, %p388
      %p391 = scmp.ne.s32.totalorder %s376, %s390
      %p392 = scmp.eq.s32.totalorder %s38, 0
      %p393 = por %p391, %p392
      %s395 = sadd.s32 %s394, 1
      %p398 = scmp.eq.s32.totalorder %s32, 1
      %p399 = scmp.ne.s32.totalorder %s394, %s396
      %p400 = scmp.eq.s32.totalorder %s32, 0
      %p401 = por %p399, %p400
      %p402 = scmp.ne.s32.totalorder %s394, %s396
      %p403 = scmp.eq.s32.totalorder %s37, 1
      %p404 = por %p402, %p403
      %p405 = scmp.ne.s32.totalorder %s396, %s397
      %p406 = scmp.eq.s32.totalorder %s37, 0
      %p407 = por %p405, %p406
      %p408 = scmp.ne.s32.totalorder %s396, %s397
      %p409 = scmp.eq.s32.totalorder %s38, 1
      %p410 = por %p408, %p409
      %p412 = scmp.ne.s32.totalorder %s397, %s411
      %p413 = scmp.eq.s32.totalorder %s38, 0
      %p414 = por %p412, %p413
      %s416 = sadd.s32 %s415, 1
      %p419 = scmp.eq.s32.totalorder %s32, 1
      %p420 = scmp.ne.s32.totalorder %s415, %s417
      %p421 = scmp.eq.s32.totalorder %s32, 0
      %p422 = por %p420, %p421
      %p423 = scmp.ne.s32.totalorder %s415, %s417
      %p424 = scmp.eq.s32.totalorder %s37, 1
      %p425 = por %p423, %p424
      %p426 = scmp.ne.s32.totalorder %s417, %s418
      %p427 = scmp.eq.s32.totalorder %s37, 0
      %p428 = por %p426, %p427
      %p429 = scmp.ne.s32.totalorder %s417, %s418
      %p430 = scmp.eq.s32.totalorder %s38, 1
      %p431 = por %p429, %p430
      %p433 = scmp.ne.s32.totalorder %s418, %s432
      %p434 = scmp.eq.s32.totalorder %s38, 0
      %p435 = por %p433, %p434
      %s437 = sadd.s32 %s436, 1
      %p440 = scmp.eq.s32.totalorder %s32, 1
      %p441 = scmp.ne.s32.totalorder %s436, %s438
      %p442 = scmp.eq.s32.totalorder %s32, 0
      %p443 = por %p441, %p442
      %p444 = scmp.ne.s32.totalorder %s436, %s438
      %p445 = scmp.eq.s32.totalorder %s37, 1
      %p446 = por %p444, %p445
      %p447 = scmp.ne.s32.totalorder %s438, %s439
      %p448 = scmp.eq.s32.totalorder %s37, 0
      %p449 = por %p447, %p448
      %p450 = scmp.ne.s32.totalorder %s438, %s439
      %p451 = scmp.eq.s32.totalorder %s38, 1
      %p452 = por %p450, %p451
      %p454 = scmp.ne.s32.totalorder %s439, %s453
      %p455 = scmp.eq.s32.totalorder %s38, 0
      %p456 = por %p454, %p455
      %s458 = sadd.s32 %s457, 1
      %p461 = scmp.eq.s32.totalorder %s32, 1
      %p462 = scmp.ne.s32.totalorder %s457, %s459
      %p463 = scmp.eq.s32.totalorder %s32, 0
      %p464 = por %p462, %p463
      %p465 = scmp.ne.s32.totalorder %s457, %s459
      %p466 = scmp.eq.s32.totalorder %s37, 1
      %p467 = por %p465, %p466
      %p468 = scmp.ne.s32.totalorder %s459, %s460
      %p469 = scmp.eq.s32.totalorder %s37, 0
      %p470 = por %p468, %p469
      %p471 = scmp.ne.s32.totalorder %s459, %s460
      %p472 = scmp.eq.s32.totalorder %s38, 1
      %p473 = por %p471, %p472
      %p475 = scmp.ne.s32.totalorder %s460, %s474
      %p476 = scmp.eq.s32.totalorder %s38, 0
      %p477 = por %p475, %p476
      %p478 = scmp.le.s32.totalorder 1, %s32
      %p479 = scmp.lt.s32.totalorder %s32, 3
      %p480 = pnand %p478, %p479
      %p481 = pneg %p480
      // Predicated region
      $region9: #{tpu_custom_call.1} parent=5 // pred_check
        _
      $region10: #{tpu_custom_call.1} parent=5 // pred_check_branch
        %483 = sbr.rel (%p480) target = $region12
      $region11: #{tpu_custom_call.1} parent=5 // pred_region
        %s484 = ssub.s32 %s32, 1
        // Predicated region
        $region13: #{tpu_custom_call.1} parent=11 // pred_check
          %p485 = pneg %p53
        $region14: #{tpu_custom_call.1} parent=11 // pred_check_branch
          %487 = sbr.rel (%p485) target = $region16
        $region15: #{tpu_custom_call.1} parent=11 // pred_region
          %489 = vsyncadd [#allocation7], 0
          %s490 = sshll.u32 %s0, 4
          %s491 = int_to_ptr.hbm [resolvable:$true] %s490
          %s492 = sshll.u32 [#allocation6], 4
          %s493 = int_to_ptr.vmem [resolvable:$true] %s492
          %498 = dma.hbm_to_vmem [thread:$0]  %s491, 32, %s493, [#allocation7], 16, 16, 1
        $region16: #{tpu_custom_call.1} parent=11 // pred_fallthru
          _
        // Predicated region
        $region17: #{tpu_custom_call.1} parent=11 // pred_check
          %p499 = pneg %p386
        $region18: #{tpu_custom_call.1} parent=11 // pred_check_branch
          %501 = sbr.rel (%p499) target = $region20
        $region19: #{tpu_custom_call.1} parent=11 // pred_region
          _
        $region20: #{tpu_custom_call.1} parent=11 // pred_fallthru
          _
        // Predicated region
        $region21: #{tpu_custom_call.1} parent=11 // pred_check
          %p502 = pneg %p407
        $region22: #{tpu_custom_call.1} parent=11 // pred_check_branch
          %504 = sbr.rel (%p502) target = $region24
        $region23: #{tpu_custom_call.1} parent=11 // pred_region
          _
        $region24: #{tpu_custom_call.1} parent=11 // pred_fallthru
          _
        // Predicated region
        $region25: #{tpu_custom_call.1} parent=11 // pred_check
          %p505 = pneg %p428
        $region26: #{tpu_custom_call.1} parent=11 // pred_check_branch
          %507 = sbr.rel (%p505) target = $region28
        $region27: #{tpu_custom_call.1} parent=11 // pred_region
          %509 = vsyncadd [#allocation13], 0
          %s510 = sshll.u32 %s16, 4
          %s511 = int_to_ptr.hbm [resolvable:$true] %s510
          %s512 = sshll.u32 [#allocation14], 4
          %s513 = int_to_ptr.vmem [resolvable:$true] %s512
          %518 = dma.hbm_to_vmem [thread:$0]  %s511, 256, %s513, [#allocation13], 64, 64, 4
        $region28: #{tpu_custom_call.1} parent=11 // pred_fallthru
          _
        // Predicated region
        $region29: #{tpu_custom_call.1} parent=11 // pred_check
          %p519 = pneg %p449
        $region30: #{tpu_custom_call.1} parent=11 // pred_check_branch
          %521 = sbr.rel (%p519) target = $region32
        $region31: #{tpu_custom_call.1} parent=11 // pred_region
          _
        $region32: #{tpu_custom_call.1} parent=11 // pred_fallthru
          _
      $region12: #{tpu_custom_call.1} parent=5 // pred_fallthru
        _
      %p522 = scmp.lt.s32.totalorder %s32, 2
      // Predicated region
      $region33: #{tpu_custom_call.1} parent=5 // pred_check
        %p523 = pneg %p522
      $region34: #{tpu_custom_call.1} parent=5 // pred_check_branch
        %525 = sbr.rel (%p523) target = $region36
      $region35: #{tpu_custom_call.1} parent=5 // pred_region
        // Predicated region
        $region37: #{tpu_custom_call.1} parent=35 // pred_check
          %p526 = pneg %p73
        $region38: #{tpu_custom_call.1} parent=35 // pred_check_branch
          %528 = sbr.rel (%p526) target = $region40
        $region39: #{tpu_custom_call.1} parent=35 // pred_region
          %p529 = scmp.lt.s32.totalorder %s32, 1
          %s530 = scalar_select %p529, %s32, 1
          %s531 = smul.addr %s530, 4
          %s532 = smul.addr %s531, 4
          %s533 = scalar_lea.vmem %s2, %s532
        $region40: #{tpu_custom_call.1} parent=35 // pred_fallthru
          _
        // Predicated region
        $region41: #{tpu_custom_call.1} parent=35 // pred_check
          %p534 = pneg %p99
        $region42: #{tpu_custom_call.1} parent=35 // pred_check_branch
          %536 = sbr.rel (%p534) target = $region44
        $region43: #{tpu_custom_call.1} parent=35 // pred_region
          %s537 = sand.u32 %s32, 1
          %s538 = scalar_lea.sflag [#allocation10], %s537
          %s539 = sand.u32 %s89, 1
          %s540 = scalar_lea.vmem [#allocation9], %s539
          %542 = vsyncadd %s538, 0
          %s543 = scalar_lea.hbm %s3, %s32
          %s545 = sshll.u32 %s543, 4
          %s546 = int_to_ptr.hbm [resolvable:$true] %s545
          %s547 = sshll.u32 %s540, 4
          %s548 = int_to_ptr.vmem [resolvable:$true] %s547
          %550 = dma.hbm_to_vmem [thread:$0]  %s546, 16, %s548, %s538
        $region44: #{tpu_custom_call.1} parent=35 // pred_fallthru
          _
        // Predicated region
        $region45: #{tpu_custom_call.1} parent=35 // pred_check
          %p551 = pneg %p125
        $region46: #{tpu_custom_call.1} parent=35 // pred_check_branch
          %553 = sbr.rel (%p551) target = $region48
        $region47: #{tpu_custom_call.1} parent=35 // pred_region
          %p554 = scmp.lt.s32.totalorder %s32, 1
          %s555 = scalar_select %p554, %s32, 1
          %s556 = smul.addr %s555, 4
          %s557 = smul.addr %s556, 4
          %s558 = scalar_lea.vmem %s4, %s557
        $region48: #{tpu_custom_call.1} parent=35 // pred_fallthru
          _
        // Predicated region
        $region49: #{tpu_custom_call.1} parent=35 // pred_check
          %p559 = pneg %p151
        $region50: #{tpu_custom_call.1} parent=35 // pred_check_branch
          %561 = sbr.rel (%p559) target = $region52
        $region51: #{tpu_custom_call.1} parent=35 // pred_region
          %p562 = scmp.lt.s32.totalorder %s32, 1
          %s563 = scalar_select %p562, %s32, 1
          %s564 = scalar_lea.vmem %s5, %s563
        $region52: #{tpu_custom_call.1} parent=35 // pred_fallthru
          _
        // Predicated region
        $region53: #{tpu_custom_call.1} parent=35 // pred_check
          %p565 = pneg %p177
        $region54: #{tpu_custom_call.1} parent=35 // pred_check_branch
          %567 = sbr.rel (%p565) target = $region56
        $region55: #{tpu_custom_call.1} parent=35 // pred_region
          %p568 = scmp.lt.s32.totalorder %s32, 1
          %s569 = scalar_select %p568, %s32, 1
          %s570 = scalar_lea.vmem %s6, %s569
        $region56: #{tpu_custom_call.1} parent=35 // pred_fallthru
          _
        // Predicated region
        $region57: #{tpu_custom_call.1} parent=35 // pred_check
          %p571 = pneg %p203
        $region58: #{tpu_custom_call.1} parent=35 // pred_check_branch
          %573 = sbr.rel (%p571) target = $region60
        $region59: #{tpu_custom_call.1} parent=35 // pred_region
          %s574 = sand.u32 %s32, 1
          %s575 = scalar_lea.sflag [#allocation10], %s574
          %s576 = sand.u32 %s193, 1
          %s577 = scalar_lea.vmem [#allocation11], %s576
          %579 = vsyncadd %s575, 0
          %s580 = scalar_lea.hbm %s7, %s32
          %s582 = sshll.u32 %s580, 4
          %s583 = int_to_ptr.hbm [resolvable:$true] %s582
          %s584 = sshll.u32 %s577, 4
          %s585 = int_to_ptr.vmem [resolvable:$true] %s584
          %587 = dma.hbm_to_vmem [thread:$0]  %s583, 16, %s585, %s575
        $region60: #{tpu_custom_call.1} parent=35 // pred_fallthru
          _
        // Predicated region
        $region61: #{tpu_custom_call.1} parent=35 // pred_check
          %p588 = pneg %p229
        $region62: #{tpu_custom_call.1} parent=35 // pred_check_branch
          %590 = sbr.rel (%p588) target = $region64
        $region63: #{tpu_custom_call.1} parent=35 // pred_region
          %p591 = scmp.lt.s32.totalorder %s32, 1
          %s592 = scalar_select %p591, %s32, 1
          %s593 = smul.addr %s592, 4
          %s594 = smul.addr %s593, 4
          %s595 = scalar_lea.vmem %s8, %s594
        $region64: #{tpu_custom_call.1} parent=35 // pred_fallthru
          _
        // Predicated region
        $region65: #{tpu_custom_call.1} parent=35 // pred_check
          %p596 = pneg %p255
        $region66: #{tpu_custom_call.1} parent=35 // pred_check_branch
          %598 = sbr.rel (%p596) target = $region68
        $region67: #{tpu_custom_call.1} parent=35 // pred_region
          %p599 = scmp.lt.s32.totalorder %s32, 1
          %s600 = scalar_select %p599, %s32, 1
          %s601 = scalar_lea.vmem %s9, %s600
        $region68: #{tpu_custom_call.1} parent=35 // pred_fallthru
          _
        // Predicated region
        $region69: #{tpu_custom_call.1} parent=35 // pred_check
          %p602 = pneg %p281
        $region70: #{tpu_custom_call.1} parent=35 // pred_check_branch
          %604 = sbr.rel (%p602) target = $region72
        $region71: #{tpu_custom_call.1} parent=35 // pred_region
          %p605 = scmp.lt.s32.totalorder %s32, 1
          %s606 = scalar_select %p605, %s32, 1
          %s607 = smul.addr %s606, 8
          %s608 = smul.addr %s607, 4
          %s609 = scalar_lea.vmem %s10, %s608
        $region72: #{tpu_custom_call.1} parent=35 // pred_fallthru
          _
        // Predicated region
        $region73: #{tpu_custom_call.1} parent=35 // pred_check
          %p610 = pneg %p307
        $region74: #{tpu_custom_call.1} parent=35 // pred_check_branch
          %612 = sbr.rel (%p610) target = $region76
        $region75: #{tpu_custom_call.1} parent=35 // pred_region
          %p613 = scmp.lt.s32.totalorder %s32, 1
          %s614 = scalar_select %p613, %s32, 1
          %s615 = scalar_lea.vmem %s11, %s614
        $region76: #{tpu_custom_call.1} parent=35 // pred_fallthru
          _
        // Predicated region
        $region77: #{tpu_custom_call.1} parent=35 // pred_check
          %p616 = pneg %p333
        $region78: #{tpu_custom_call.1} parent=35 // pred_check_branch
          %618 = sbr.rel (%p616) target = $region80
        $region79: #{tpu_custom_call.1} parent=35 // pred_region
          %p619 = scmp.lt.s32.totalorder %s32, 1
          %s620 = scalar_select %p619, %s32, 1
          %s621 = scalar_lea.vmem %s12, %s620
        $region80: #{tpu_custom_call.1} parent=35 // pred_fallthru
          _
        // Predicated region
        $region81: #{tpu_custom_call.1} parent=35 // pred_check
          %p622 = pneg %p359
        $region82: #{tpu_custom_call.1} parent=35 // pred_check_branch
          %624 = sbr.rel (%p622) target = $region84
        $region83: #{tpu_custom_call.1} parent=35 // pred_region
          %s625 = sand.u32 %s32, 1
          %s626 = scalar_lea.sflag [#allocation13], %s625
          %s627 = sand.u32 %s349, 1
          %s628 = scalar_lea.vmem [#allocation12], %s627
          %630 = vsyncadd %s626, 0
          %s631 = scalar_lea.hbm %s13, %s32
          %s633 = sshll.u32 %s631, 4
          %s634 = int_to_ptr.hbm [resolvable:$true] %s633
          %s635 = sshll.u32 %s628, 4
          %s636 = int_to_ptr.vmem [resolvable:$true] %s635
          %638 = dma.hbm_to_vmem [thread:$0]  %s634, 16, %s636, %s626
        $region84: #{tpu_custom_call.1} parent=35 // pred_fallthru
          _
      $region36: #{tpu_custom_call.1} parent=5 // pred_fallthru
        _
      %p639 = scmp.le.s32.totalorder 1, %s32
      %p640 = scmp.lt.s32.totalorder %s32, 3
      %p641 = pnand %p639, %p640
      %p642 = pneg %p641
      // Predicated region
      $region85: #{tpu_custom_call.1} parent=5 // pred_check
        _
      $region86: #{tpu_custom_call.1} parent=5 // pred_check_branch
        %644 = sbr.rel (%p641) target = $region88
      $region87: #{tpu_custom_call.1} parent=5 // pred_region
        %s645 = ssub.s32 %s32, 1
        // Predicated region
        $region89: #{tpu_custom_call.1} parent=87 // pred_check
          %p646 = pneg %p53
        $region90: #{tpu_custom_call.1} parent=87 // pred_check_branch
          %648 = sbr.rel (%p646) target = $region92
        $region91: #{tpu_custom_call.1} parent=87 // pred_region
          %650 = dma.done [#allocation7], 32
        $region92: #{tpu_custom_call.1} parent=87 // pred_fallthru
          _
        %s651 = sand.u32 %s37, 1
        %s652 = scalar_lea.sflag [#allocation10], %s651
        %s653 = sand.u32 %s92, 1
        %s654 = scalar_lea.vmem [#allocation9], %s653
        // Predicated region
        $region93: #{tpu_custom_call.1} parent=87 // pred_check
          %p655 = pneg %p105
        $region94: #{tpu_custom_call.1} parent=87 // pred_check_branch
          %657 = sbr.rel (%p655) target = $region96
        $region95: #{tpu_custom_call.1} parent=87 // pred_region
          %659 = dma.done %s652, 16
        $region96: #{tpu_custom_call.1} parent=87 // pred_fallthru
          _
        %s660 = sand.u32 %s37, 1
        %s661 = scalar_lea.sflag [#allocation10], %s660
        %s662 = sand.u32 %s196, 1
        %s663 = scalar_lea.vmem [#allocation11], %s662
        // Predicated region
        $region97: #{tpu_custom_call.1} parent=87 // pred_check
          %p664 = pneg %p209
        $region98: #{tpu_custom_call.1} parent=87 // pred_check_branch
          %666 = sbr.rel (%p664) target = $region100
        $region99: #{tpu_custom_call.1} parent=87 // pred_region
          %668 = dma.done %s661, 16
        $region100: #{tpu_custom_call.1} parent=87 // pred_fallthru
          _
        %s669 = sand.u32 %s37, 1
        %s670 = scalar_lea.sflag [#allocation13], %s669
        %s671 = sand.u32 %s352, 1
        %s672 = scalar_lea.vmem [#allocation12], %s671
        // Predicated region
        $region101: #{tpu_custom_call.1} parent=87 // pred_check
          %p673 = pneg %p365
        $region102: #{tpu_custom_call.1} parent=87 // pred_check_branch
          %675 = sbr.rel (%p673) target = $region104
        $region103: #{tpu_custom_call.1} parent=87 // pred_region
          %677 = dma.done %s670, 16
        $region104: #{tpu_custom_call.1} parent=87 // pred_fallthru
          _
        // Predicated region
        $region105: #{tpu_custom_call.1} parent=87 // pred_check
          %p678 = pneg %p428
        $region106: #{tpu_custom_call.1} parent=87 // pred_check_branch
          %680 = sbr.rel (%p678) target = $region108
        $region107: #{tpu_custom_call.1} parent=87 // pred_region
          %682 = dma.done [#allocation13], 256
        $region108: #{tpu_custom_call.1} parent=87 // pred_fallthru
          _
        %p683 = pneg %p53
        %p684 = pneg %p50
        %p685 = scmp.lt.s32.totalorder %s37, 1
        %s686 = scalar_select %p685, %s37, 1
        %s687 = smul.addr %s686, 4
        %s688 = smul.addr %s687, 4
        %s689 = scalar_lea.vmem %s2, %s688
        %p690 = pneg %p79
        %p691 = pneg %p76
        %s692 = sand.u32 %s37, 1
        %s693 = scalar_lea.sflag [#allocation10], %s692
        %s694 = sand.u32 %s92, 1
        %s695 = scalar_lea.vmem [#allocation9], %s694
        %p696 = pneg %p105
        %p697 = pneg %p102
        %p698 = scmp.lt.s32.totalorder %s37, 1
        %s699 = scalar_select %p698, %s37, 1
        %s700 = smul.addr %s699, 4
        %s701 = smul.addr %s700, 4
        %s702 = scalar_lea.vmem %s4, %s701
        %p703 = pneg %p131
        %p704 = pneg %p128
        %p705 = scmp.lt.s32.totalorder %s37, 1
        %s706 = scalar_select %p705, %s37, 1
        %s707 = scalar_lea.vmem %s5, %s706
        %p708 = pneg %p157
        %p709 = pneg %p154
        %p710 = scmp.lt.s32.totalorder %s37, 1
        %s711 = scalar_select %p710, %s37, 1
        %s712 = scalar_lea.vmem %s6, %s711
        %p713 = pneg %p183
        %p714 = pneg %p180
        %s715 = sand.u32 %s37, 1
        %s716 = scalar_lea.sflag [#allocation10], %s715
        %s717 = sand.u32 %s196, 1
        %s718 = scalar_lea.vmem [#allocation11], %s717
        %p719 = pneg %p209
        %p720 = pneg %p206
        %p721 = scmp.lt.s32.totalorder %s37, 1
        %s722 = scalar_select %p721, %s37, 1
        %s723 = smul.addr %s722, 4
        %s724 = smul.addr %s723, 4
        %s725 = scalar_lea.vmem %s8, %s724
        %p726 = pneg %p235
        %p727 = pneg %p232
        %p728 = scmp.lt.s32.totalorder %s37, 1
        %s729 = scalar_select %p728, %s37, 1
        %s730 = scalar_lea.vmem %s9, %s729
        %p731 = pneg %p261
        %p732 = pneg %p258
        %p733 = scmp.lt.s32.totalorder %s37, 1
        %s734 = scalar_select %p733, %s37, 1
        %s735 = smul.addr %s734, 8
        %s736 = smul.addr %s735, 4
        %s737 = scalar_lea.vmem %s10, %s736
        %p738 = pneg %p287
        %p739 = pneg %p284
        %p740 = scmp.lt.s32.totalorder %s37, 1
        %s741 = scalar_select %p740, %s37, 1
        %s742 = scalar_lea.vmem %s11, %s741
        %p743 = pneg %p313
        %p744 = pneg %p310
        %p745 = scmp.lt.s32.totalorder %s37, 1
        %s746 = scalar_select %p745, %s37, 1
        %s747 = scalar_lea.vmem %s12, %s746
        %p748 = pneg %p339
        %p749 = pneg %p336
        %s750 = sand.u32 %s37, 1
        %s751 = scalar_lea.sflag [#allocation13], %s750
        %s752 = sand.u32 %s352, 1
        %s753 = scalar_lea.vmem [#allocation12], %s752
        %p754 = pneg %p365
        %p755 = pneg %p362
        %p756 = pneg %p386
        %p757 = pneg %p383
        %p758 = pneg %p407
        %p759 = pneg %p404
        %p760 = pneg %p428
        %p761 = pneg %p425
        %p762 = pneg %p449
        %p763 = pneg %p446
        %p764 = pneg %p470
        %p765 = pneg %p467
        %p766 = scmp.lt.s32.totalorder %s37, 1
        %s767 = scalar_select %p766, %s37, 1
        %s768 = smul.addr %s767, 4
        %s769 = smul.addr %s768, 4
        %s770 = scalar_lea.vmem %s2, %s769
        %p771 = scmp.lt.s32.totalorder %s37, 1
        %s772 = scalar_select %p771, %s37, 1
        %s773 = smul.addr %s772, 4
        %s774 = smul.addr %s773, 4
        %s775 = scalar_lea.vmem %s4, %s774
        %p776 = scmp.lt.s32.totalorder %s37, 1
        %s777 = scalar_select %p776, %s37, 1
        %s778 = scalar_lea.vmem %s5, %s777
        %p779 = scmp.lt.s32.totalorder %s37, 1
        %s780 = scalar_select %p779, %s37, 1
        %s781 = scalar_lea.vmem %s6, %s780
        %p782 = scmp.lt.s32.totalorder %s37, 1
        %s783 = scalar_select %p782, %s37, 1
        %s784 = smul.addr %s783, 4
        %s785 = smul.addr %s784, 4
        %s786 = scalar_lea.vmem %s8, %s785
        %p787 = scmp.lt.s32.totalorder %s37, 1
        %s788 = scalar_select %p787, %s37, 1
        %s789 = scalar_lea.vmem %s9, %s788
        %p790 = scmp.lt.s32.totalorder %s37, 1
        %s791 = scalar_select %p790, %s37, 1
        %s792 = smul.addr %s791, 8
        %s793 = smul.addr %s792, 4
        %s794 = scalar_lea.vmem %s10, %s793
        %p795 = scmp.lt.s32.totalorder %s37, 1
        %s796 = scalar_select %p795, %s37, 1
        %s797 = scalar_lea.vmem %s11, %s796
        %p798 = scmp.lt.s32.totalorder %s37, 1
        %s799 = scalar_select %p798, %s37, 1
        %s800 = scalar_lea.vmem %s12, %s799
        %p802 = scmp.eq.s32.totalorder %s37, 0
        // Predicated region
        $region109: #{tpu_custom_call.1} parent=87 // pred_check
          %p803 = pneg %p802
        $region110: #{tpu_custom_call.1} parent=87 // pred_check_branch
          %805 = sbr.rel (%p803) target = $region112
        $region111: #{tpu_custom_call.1} parent=87 // pred_region
          // Predicated region
          $region113: #{tpu_custom_call.1} parent=111 // pred_check
            _
          $region114: #{tpu_custom_call.1} parent=111 // pred_check_branch
            %807 = sbr.rel target = $region116
          $region115: #{tpu_custom_call.1} parent=111 // pred_region
            %808 = sst [smem:[#allocation18]] [#allocation17]
            %809 = sst [smem:[#allocation19]] [#allocation16]
          $region116: #{tpu_custom_call.1} parent=111 // pred_fallthru
            _
          %811 = shalt.err (0)
          %s813 = sshll.u32 %s1, 4
          %s814 = int_to_ptr.hbm [resolvable:$true] %s813
          %s815 = sshll.u32 [#allocation2], 4
          %s816 = int_to_ptr.vmem [resolvable:$true] %s815
          %818 = dma.hbm_to_vmem [thread:$0]  %s814, 256, %s816, [#allocation5]
          %s819 = smul.u32 16, 1
          %s820 = sshll.u32 %s819, 4
          %821 = dma.done [#allocation5], %s820
          %v822 = vld [vmem:[#allocation2] sm:$0xff]
          %v823 = vld [vmem:[#allocation2 + $0x8] sm:$0xff]
          %v824 = vld [vmem:[%s14] sm:$0x1]
          %v825 = vld [vmem:[%s15] sm:$0x1]
          %vm826 = vcmask 261120
          %v827 = vsel %vm826, %v822, 0.0
          %828 = vadd.xlane.f32.xlu0 %v827
          %v829 = vpop.xlane.xlu0 %828
          %v830 = vsel %vm826, %v823, 0.0
          %831 = vadd.xlane.f32.xlu0 %v830
          %v832 = vpop.xlane.xlu0 %831
          %v833 = vrcp.pop 32.0
          %v834 = vmul.f32 32.0, %v833
          %v835 = vsub.f32 1.0, %v834
          %v836 = vmul.f32 %v833, %v835
          %v837 = vadd.f32 %v833, %v836
          %vm838 = vweird.f32 %v833
          %v839 = vsel %vm838, %v833, %v837
          %v840 = vmul.f32 %v829, %v839
          %v841 = vmul.f32 %v832, %v839
          %v842 = vsub.f32 %v822, %v840
          %v843 = vsub.f32 %v823, %v841
          %v844 = vmul.f32 %v842, %v842
          %v845 = vmul.f32 %v843, %v843
          %v846 = vsel %vm826, %v844, 0.0
          %847 = vadd.xlane.f32.xlu0 %v846
          %v848 = vpop.xlane.xlu0 %847
          %v849 = vsel %vm826, %v845, 0.0
          %850 = vadd.xlane.f32.xlu0 %v849
          %v851 = vpop.xlane.xlu0 %850
          %v852 = vmul.f32 %v848, %v839
          %v853 = vmul.f32 %v851, %v839
          %v854 = vadd.f32 %v852, 1e-12
          %v855 = vadd.f32 %v853, 1e-12
          %v856 = vrsqrt.pop %v854
          %v857 = vmul.f32 %v856, %v854
          %v858 = vmul.f32 %v857, %v856
          %v859 = vmul.f32 0.5, %v858
          %v860 = vsub.f32 1.5, %v859
          %v861 = vmul.f32 %v856, %v860
          %vm862 = vweird.f32 %v854
          %vm863 = vweird.f32 %v856
          %vm864 = vmor %vm862, %vm863
          %v865 = vsel %vm864, %v856, %v861
          %v866 = vrsqrt.pop %v855
          %v867 = vmul.f32 %v866, %v855
          %v868 = vmul.f32 %v867, %v866
          %v869 = vmul.f32 0.5, %v868
          %v870 = vsub.f32 1.5, %v869
          %v871 = vmul.f32 %v866, %v870
          %vm872 = vweird.f32 %v855
          %vm873 = vweird.f32 %v866
          %vm874 = vmor %vm872, %vm873
          %v875 = vsel %vm874, %v866, %v871
          %v876 = vmul.f32 %v842, %v865
          %v877 = vmul.f32 %v843, %v875
          %v879 = vperm.slane %v824, 0
          %v881 = vmul.f32 %v876, %v879
          %v882 = vmul.f32 %v877, %v879
          %v884 = vperm.slane %v825, 0
          %v886 = vadd.f32 %v881, %v884
          %v887 = vadd.f32 %v882, %v884
          %888 = vst.msk [vmem:[#allocation2] sm:$0xff] %vm826, %v886
          %889 = vst.msk [vmem:[#allocation2 + $0x8] sm:$0xff] %vm826, %v887
        $region112: #{tpu_custom_call.1} parent=87 // pred_fallthru
          _
        %v890 = vld [vmem:[%s770] sm:$0xf]
        %v891 = vld [vmem:[%s770 + $0x4] sm:$0xf]
        %v892 = vld [vmem:[%s770 + $0x8] sm:$0xf]
        %v893 = vld [vmem:[%s770 + $0xc] sm:$0xf]
        %v894 = vld [vmem:[%s654] sm:$0x1]
        %v895 = vld [vmem:[%s775] sm:$0xf]
        %v896 = vld [vmem:[%s775 + $0x4] sm:$0xf]
        %v897 = vld [vmem:[%s775 + $0x8] sm:$0xf]
        %v898 = vld [vmem:[%s775 + $0xc] sm:$0xf]
        %v899 = vld [vmem:[%s778] sm:$0x1]
        %v900 = vld [vmem:[%s781] sm:$0x1]
        %v901 = vld [vmem:[%s663] sm:$0x1]
        %v902 = vld [vmem:[%s786] sm:$0xf]
        %v903 = vld [vmem:[%s786 + $0x4] sm:$0xf]
        %v904 = vld [vmem:[%s786 + $0x8] sm:$0xf]
        %v905 = vld [vmem:[%s786 + $0xc] sm:$0xf]
        %v906 = vld [vmem:[%s789] sm:$0x1]
        %v907 = vld [vmem:[%s794] sm:$0xf]
        %v908 = vld [vmem:[%s794 + $0x4] sm:$0xf]
        %v909 = vld [vmem:[%s794 + $0x8] sm:$0xf]
        %v910 = vld [vmem:[%s794 + $0xc] sm:$0xf]
        %v911 = vld [vmem:[%s794 + $0x10] sm:$0xf]
        %v912 = vld [vmem:[%s794 + $0x14] sm:$0xf]
        %v913 = vld [vmem:[%s794 + $0x18] sm:$0xf]
        %v914 = vld [vmem:[%s794 + $0x1c] sm:$0xf]
        %v915 = vld [vmem:[%s797] sm:$0x1]
        %v916 = vld [vmem:[%s800] sm:$0x1]
        %v917 = vld [vmem:[%s672] sm:$0x1]
        %v918 = vld [vmem:[#allocation2] sm:$0xff]
        %v919 = vld [vmem:[#allocation2 + $0x8] sm:$0xff]
        %v920 = vpack.c.bf16 %v919, %v918
        %v922 = vperm.slane %v894, 0
        %v928 = vunpack.c.l.b16 %v890
        %v929 = vunpack.c.l.b16 %v891
        %v930 = vunpack.c.l.b16 %v892
        %v931 = vunpack.c.l.b16 %v893
        %v932 = vpack.c.b16 %v929, %v928
        %v933 = vpack.c.b16 %v931, %v930
        %vm936 = vcmask 261120
        %v938 = vsel %vm936, %v920, 0
        %940 = vmatpush.bf16.msra.mxu0 0
        %941 = vmatpush.bf16.msra.mxu0 0
        %942 = vmatpush.bf16.msra.mxu0 0
        %943 = vmatpush.bf16.msra.mxu0 0
        %944 = vmatpush.bf16.msra.mxu0 0
        %945 = vmatpush.bf16.msra.mxu0 0
        %946 = vmatpush.bf16.msra.mxu0 %v933
        %947 = vmatpush.bf16.msra.mxu0 %v932
        %948 = vmatmul.bf16.gmra.mxu0 %v938
        %v949 = vpop.f32.mrf.mxu0
        %v950 = vadd.f32 %v922, %v949
        %v951 = vpop.f32.mrf.mxu0
        %v952 = vadd.f32 %v922, %v951
        %953 = vdwg.mxu0
        %v954 = vpack.c.bf16 %v950, %v950
        %v955 = vpack.c.bf16 %v952, %v952
        %vm956 = vcmask 781312
        %957 = vst.msk [vmem:[#allocation3] sm:$0xf] %vm956, %v954
        %958 = vst.msk [vmem:[#allocation3 + $0x4] sm:$0xf] %vm956, %v955
        %v959 = vld [vmem:[#allocation6] sm:$0x1]
        %v960 = vld [vmem:[#allocation6 + $0x1] sm:$0x1]
        %v961 = vld [vmem:[#allocation3] sm:$0xf]
        %v962 = vld [vmem:[#allocation3 + $0x4] sm:$0xf]
        %v964 = vunpack.c.l.b16 %v961
        %v965 = vpack.c.b16 %v964, %v964
        %966 = vrot.lane.b32.xlu0 %v965, 96
        %v967 = vpop.permute.xlu0 %966
        %vm968 = vcmask 64512
        %v970 = vsel %vm968, %v961, 0
        %v973 = vsel %vm968, %v967, 0
        %975 = vmatpush.bf16.xpose.msra.mxu0 0
        %976 = vmatpush.bf16.xpose.msra.mxu0 0
        %977 = vmatpush.bf16.xpose.msra.mxu0 0
        %978 = vmatpush.bf16.xpose.msra.mxu0 0
        %979 = vmatpush.bf16.xpose.msra.mxu0 0
        %980 = vmatpush.bf16.xpose.msra.mxu0 0
        %981 = vmatpush.bf16.xpose.msra.mxu0 0
        %982 = vmatpush.bf16.xpose.msra.mxu0 %v973
        %983 = vmatmul.bf16.gmra.mxu0 %v970
        %v984 = vpop.f32.mrf.mxu0
        %v985 = vadd.f32 0.0, %v984
        %v986 = vpop.f32.mrf.mxu0
        %987 = vdwg.mxu0
        %v989 = vunpack.c.l.b16 %v962
        %v990 = vpack.c.b16 %v989, %v989
        %991 = vrot.lane.b32.xlu0 %v990, 96
        %v992 = vpop.permute.xlu0 %991
        %v994 = vsel %vm968, %v962, 0
        %v997 = vsel %vm968, %v992, 0
        %999 = vmatpush.bf16.xpose.msra.mxu0 0
        %1000 = vmatpush.bf16.xpose.msra.mxu0 0
        %1001 = vmatpush.bf16.xpose.msra.mxu0 0
        %1002 = vmatpush.bf16.xpose.msra.mxu0 0
        %1003 = vmatpush.bf16.xpose.msra.mxu0 0
        %1004 = vmatpush.bf16.xpose.msra.mxu0 0
        %1005 = vmatpush.bf16.xpose.msra.mxu0 0
        %1006 = vmatpush.bf16.xpose.msra.mxu0 %v997
        %1007 = vmatmul.bf16.gmra.mxu0 %v994
        %v1008 = vpop.f32.mrf.mxu0
        %v1009 = vadd.f32 0.0, %v1008
        %v1010 = vpop.f32.mrf.mxu0
        %1011 = vdwg.mxu0
        %v1012 = vmul.f32 %v985, 0.35355338
        %v1013 = vmul.f32 %v1009, 0.35355338
        %v1016 = vperm.slane %v959, 0
        %v1017 = vperm.slane %v960, 0
        %v1020 = vadd.f32 %v1012, %v1016
        %v1021 = vadd.f32 %v1013, %v1017
        %v1022 = vsel %vm968, %v1020, -inf
        %1023 = vmax.xlane.f32.xlu0 %v1022
        %v1024 = vpop.xlane.xlu0 %1023
        %v1025 = vsel %vm968, %v1021, -inf
        %1026 = vmax.xlane.f32.xlu0 %v1025
        %v1027 = vpop.xlane.xlu0 %1026
        %v1028 = vsub.f32 %v1020, %v1024
        %v1029 = vsub.f32 %v1021, %v1027
        %v1030 = vmul.f32 %v1028, 1.442695
        %v1031 = vpow.pop %v1030
        %v1032 = vmul.f32 %v1029, 1.442695
        %v1033 = vpow.pop %v1032
        %v1034 = vsel %vm968, %v1031, 0.0
        %1035 = vadd.xlane.f32.xlu0 %v1034
        %v1036 = vpop.xlane.xlu0 %1035
        %v1037 = vsel %vm968, %v1033, 0.0
        %1038 = vadd.xlane.f32.xlu0 %v1037
        %v1039 = vpop.xlane.xlu0 %1038
        %v1040 = vrcp.pop %v1036
        %v1041 = vrcp.pop %v1039
        %v1042 = vmul.f32 %v1031, %v1040
        %v1043 = vmul.f32 %v1033, %v1041
        %v1044 = vpack.c.bf16 %v1042, %v1042
        %v1045 = vpack.c.bf16 %v1043, %v1043
        %1046 = vrot.lane.b32.xlu0 %v965, 64
        %v1047 = vpop.permute.xlu0 %1046
        %v1049 = vsel %vm968, %v1044, 0
        %vm1051 = vcmask 1043456
        %v1053 = vsel %vm1051, %v1047, 0
        %1055 = vmatpush.bf16.msra.mxu0 0
        %1056 = vmatpush.bf16.msra.mxu0 0
        %1057 = vmatpush.bf16.msra.mxu0 0
        %1058 = vmatpush.bf16.msra.mxu0 0
        %1059 = vmatpush.bf16.msra.mxu0 0
        %1060 = vmatpush.bf16.msra.mxu0 0
        %1061 = vmatpush.bf16.msra.mxu0 0
        %1062 = vmatpush.bf16.msra.mxu0 %v1053
        %1063 = vmatmul.bf16.gmra.mxu0 %v1049
        %v1064 = vpop.f32.mrf.mxu0
        %v1065 = vadd.f32 0.0, %v1064
        %v1066 = vpop.f32.mrf.mxu0
        %1067 = vdwg.mxu0
        %1068 = vrot.lane.b32.xlu0 %v990, 64
        %v1069 = vpop.permute.xlu0 %1068
        %v1071 = vsel %vm968, %v1045, 0
        %v1074 = vsel %vm1051, %v1069, 0
        %1076 = vmatpush.bf16.msra.mxu0 0
        %1077 = vmatpush.bf16.msra.mxu0 0
        %1078 = vmatpush.bf16.msra.mxu0 0
        %1079 = vmatpush.bf16.msra.mxu0 0
        %1080 = vmatpush.bf16.msra.mxu0 0
        %1081 = vmatpush.bf16.msra.mxu0 0
        %1082 = vmatpush.bf16.msra.mxu0 0
        %1083 = vmatpush.bf16.msra.mxu0 %v1074
        %1084 = vmatmul.bf16.gmra.mxu0 %v1071
        %v1085 = vpop.f32.mrf.mxu0
        %v1086 = vadd.f32 0.0, %v1085
        %v1087 = vpop.f32.mrf.mxu0
        %1088 = vdwg.mxu0
        %v1089 = vpack.c.bf16 %v1065, %v1065
        %v1090 = vpack.c.bf16 %v1086, %v1086
        %vm1091 = vcmask 60416
        %1092 = vst.msk [vmem:[#allocation4] sm:$0xf] %vm1091, %v1089
        %1093 = vst.msk [vmem:[#allocation4 + $0x4] sm:$0xf] %vm1091, %v1090
        %v1094 = vld [vmem:[#allocation3] sm:$0xf]
        %v1095 = vld [vmem:[#allocation3 + $0x4] sm:$0xf]
        %v1097 = vunpack.c.l.b16 %v1094
        %v1098 = vpack.c.b16 %v1097, %v1097
        %1099 = vrot.lane.b32.xlu0 %v1098, 120
        %v1100 = vpop.permute.xlu0 %1099
        %1101 = vrot.lane.b32.xlu0 %v1098, 88
        %v1102 = vpop.permute.xlu0 %1101
        %v1104 = vsel %vm968, %v1100, 0
        %v1107 = vsel %vm968, %v1102, 0
        %1109 = vmatpush.bf16.xpose.msra.mxu0 0
        %1110 = vmatpush.bf16.xpose.msra.mxu0 0
        %1111 = vmatpush.bf16.xpose.msra.mxu0 0
        %1112 = vmatpush.bf16.xpose.msra.mxu0 0
        %1113 = vmatpush.bf16.xpose.msra.mxu0 0
        %1114 = vmatpush.bf16.xpose.msra.mxu0 0
        %1115 = vmatpush.bf16.xpose.msra.mxu0 0
        %1116 = vmatpush.bf16.xpose.msra.mxu0 %v1107
        %1117 = vmatmul.bf16.gmra.mxu0 %v1104
        %v1118 = vpop.f32.mrf.mxu0
        %v1119 = vadd.f32 0.0, %v1118
        %v1120 = vpop.f32.mrf.mxu0
        %1121 = vdwg.mxu0
        %v1123 = vunpack.c.l.b16 %v1095
        %v1124 = vpack.c.b16 %v1123, %v1123
        %1125 = vrot.lane.b32.xlu0 %v1124, 120
        %v1126 = vpop.permute.xlu0 %1125
        %1127 = vrot.lane.b32.xlu0 %v1124, 88
        %v1128 = vpop.permute.xlu0 %1127
        %v1130 = vsel %vm968, %v1126, 0
        %v1133 = vsel %vm968, %v1128, 0
        %1135 = vmatpush.bf16.xpose.msra.mxu0 0
        %1136 = vmatpush.bf16.xpose.msra.mxu0 0
        %1137 = vmatpush.bf16.xpose.msra.mxu0 0
        %1138 = vmatpush.bf16.xpose.msra.mxu0 0
        %1139 = vmatpush.bf16.xpose.msra.mxu0 0
        %1140 = vmatpush.bf16.xpose.msra.mxu0 0
        %1141 = vmatpush.bf16.xpose.msra.mxu0 0
        %1142 = vmatpush.bf16.xpose.msra.mxu0 %v1133
        %1143 = vmatmul.bf16.gmra.mxu0 %v1130
        %v1144 = vpop.f32.mrf.mxu0
        %v1145 = vadd.f32 0.0, %v1144
        %v1146 = vpop.f32.mrf.mxu0
        %1147 = vdwg.mxu0
        %v1148 = vmul.f32 %v1119, 0.35355338
        %v1149 = vmul.f32 %v1145, 0.35355338
        %v1150 = vadd.f32 %v1148, %v1016
        %v1151 = vadd.f32 %v1149, %v1017
        %v1152 = vsel %vm968, %v1150, -inf
        %1153 = vmax.xlane.f32.xlu0 %v1152
        %v1154 = vpop.xlane.xlu0 %1153
        %v1155 = vsel %vm968, %v1151, -inf
        %1156 = vmax.xlane.f32.xlu0 %v1155
        %v1157 = vpop.xlane.xlu0 %1156
        %v1158 = vsub.f32 %v1150, %v1154
        %v1159 = vsub.f32 %v1151, %v1157
        %v1160 = vmul.f32 %v1158, 1.442695
        %v1161 = vpow.pop %v1160
        %v1162 = vmul.f32 %v1159, 1.442695
        %v1163 = vpow.pop %v1162
        %v1164 = vsel %vm968, %v1161, 0.0
        %1165 = vadd.xlane.f32.xlu0 %v1164
        %v1166 = vpop.xlane.xlu0 %1165
        %v1167 = vsel %vm968, %v1163, 0.0
        %1168 = vadd.xlane.f32.xlu0 %v1167
        %v1169 = vpop.xlane.xlu0 %1168
        %v1170 = vrcp.pop %v1166
        %v1171 = vrcp.pop %v1169
        %v1172 = vmul.f32 %v1161, %v1170
        %v1173 = vmul.f32 %v1163, %v1171
        %v1174 = vpack.c.bf16 %v1172, %v1172
        %v1175 = vpack.c.bf16 %v1173, %v1173
        %1176 = vrot.lane.b32.xlu0 %v1098, 56
        %v1177 = vpop.permute.xlu0 %1176
        %v1179 = vsel %vm968, %v1174, 0
        %v1182 = vsel %vm1051, %v1177, 0
        %1184 = vmatpush.bf16.msra.mxu0 0
        %1185 = vmatpush.bf16.msra.mxu0 0
        %1186 = vmatpush.bf16.msra.mxu0 0
        %1187 = vmatpush.bf16.msra.mxu0 0
        %1188 = vmatpush.bf16.msra.mxu0 0
        %1189 = vmatpush.bf16.msra.mxu0 0
        %1190 = vmatpush.bf16.msra.mxu0 0
        %1191 = vmatpush.bf16.msra.mxu0 %v1182
        %1192 = vmatmul.bf16.gmra.mxu0 %v1179
        %v1193 = vpop.f32.mrf.mxu0
        %v1194 = vadd.f32 0.0, %v1193
        %v1195 = vpop.f32.mrf.mxu0
        %1196 = vdwg.mxu0
        %1197 = vrot.lane.b32.xlu0 %v1124, 56
        %v1198 = vpop.permute.xlu0 %1197
        %v1200 = vsel %vm968, %v1175, 0
        %v1203 = vsel %vm1051, %v1198, 0
        %1205 = vmatpush.bf16.msra.mxu0 0
        %1206 = vmatpush.bf16.msra.mxu0 0
        %1207 = vmatpush.bf16.msra.mxu0 0
        %1208 = vmatpush.bf16.msra.mxu0 0
        %1209 = vmatpush.bf16.msra.mxu0 0
        %1210 = vmatpush.bf16.msra.mxu0 0
        %1211 = vmatpush.bf16.msra.mxu0 0
        %1212 = vmatpush.bf16.msra.mxu0 %v1203
        %1213 = vmatmul.bf16.gmra.mxu0 %v1200
        %v1214 = vpop.f32.mrf.mxu0
        %v1215 = vadd.f32 0.0, %v1214
        %v1216 = vpop.f32.mrf.mxu0
        %1217 = vdwg.mxu0
        %v1218 = vpack.c.bf16 %v1194, %v1194
        %v1219 = vpack.c.bf16 %v1215, %v1215
        %1222 = vrot.lane.b32.xlu0 %v1218, 8
        %v1223 = vpop.permute.xlu0 %1222
        %1224 = vrot.lane.b32.xlu0 %v1219, 8
        %v1225 = vpop.permute.xlu0 %1224
        %vm1228 = vcmask 126016
        %1229 = vst.msk [vmem:[#allocation4] sm:$0xf] %vm1228, %v1223
        %1230 = vst.msk [vmem:[#allocation4 + $0x4] sm:$0xf] %vm1228, %v1225
        %v1231 = vld [vmem:[#allocation3] sm:$0xf]
        %v1232 = vld [vmem:[#allocation3 + $0x4] sm:$0xf]
        %v1234 = vunpack.c.l.b16 %v1231
        %v1235 = vpack.c.b16 %v1234, %v1234
        %1236 = vrot.lane.b32.xlu0 %v1235, 112
        %v1237 = vpop.permute.xlu0 %1236
        %1238 = vrot.lane.b32.xlu0 %v1235, 80
        %v1239 = vpop.permute.xlu0 %1238
        %v1241 = vsel %vm968, %v1237, 0
        %v1244 = vsel %vm968, %v1239, 0
        %1246 = vmatpush.bf16.xpose.msra.mxu0 0
        %1247 = vmatpush.bf16.xpose.msra.mxu0 0
        %1248 = vmatpush.bf16.xpose.msra.mxu0 0
        %1249 = vmatpush.bf16.xpose.msra.mxu0 0
        %1250 = vmatpush.bf16.xpose.msra.mxu0 0
        %1251 = vmatpush.bf16.xpose.msra.mxu0 0
        %1252 = vmatpush.bf16.xpose.msra.mxu0 0
        %1253 = vmatpush.bf16.xpose.msra.mxu0 %v1244
        %1254 = vmatmul.bf16.gmra.mxu0 %v1241
        %v1255 = vpop.f32.mrf.mxu0
        %v1256 = vadd.f32 0.0, %v1255
        %v1257 = vpop.f32.mrf.mxu0
        %1258 = vdwg.mxu0
        %v1260 = vunpack.c.l.b16 %v1232
        %v1261 = vpack.c.b16 %v1260, %v1260
        %1262 = vrot.lane.b32.xlu0 %v1261, 112
        %v1263 = vpop.permute.xlu0 %1262
        %1264 = vrot.lane.b32.xlu0 %v1261, 80
        %v1265 = vpop.permute.xlu0 %1264
        %v1267 = vsel %vm968, %v1263, 0
        %v1270 = vsel %vm968, %v1265, 0
        %1272 = vmatpush.bf16.xpose.msra.mxu0 0
        %1273 = vmatpush.bf16.xpose.msra.mxu0 0
        %1274 = vmatpush.bf16.xpose.msra.mxu0 0
        %1275 = vmatpush.bf16.xpose.msra.mxu0 0
        %1276 = vmatpush.bf16.xpose.msra.mxu0 0
        %1277 = vmatpush.bf16.xpose.msra.mxu0 0
        %1278 = vmatpush.bf16.xpose.msra.mxu0 0
        %1279 = vmatpush.bf16.xpose.msra.mxu0 %v1270
        %1280 = vmatmul.bf16.gmra.mxu0 %v1267
        %v1281 = vpop.f32.mrf.mxu0
        %v1282 = vadd.f32 0.0, %v1281
        %v1283 = vpop.f32.mrf.mxu0
        %1284 = vdwg.mxu0
        %v1285 = vmul.f32 %v1256, 0.35355338
        %v1286 = vmul.f32 %v1282, 0.35355338
        %v1287 = vadd.f32 %v1285, %v1016
        %v1288 = vadd.f32 %v1286, %v1017
        %v1289 = vsel %vm968, %v1287, -inf
        %1290 = vmax.xlane.f32.xlu0 %v1289
        %v1291 = vpop.xlane.xlu0 %1290
        %v1292 = vsel %vm968, %v1288, -inf
        %1293 = vmax.xlane.f32.xlu0 %v1292
        %v1294 = vpop.xlane.xlu0 %1293
        %v1295 = vsub.f32 %v1287, %v1291
        %v1296 = vsub.f32 %v1288, %v1294
        %v1297 = vmul.f32 %v1295, 1.442695
        %v1298 = vpow.pop %v1297
        %v1299 = vmul.f32 %v1296, 1.442695
        %v1300 = vpow.pop %v1299
        %v1301 = vsel %vm968, %v1298, 0.0
        %1302 = vadd.xlane.f32.xlu0 %v1301
        %v1303 = vpop.xlane.xlu0 %1302
        %v1304 = vsel %vm968, %v1300, 0.0
        %1305 = vadd.xlane.f32.xlu0 %v1304
        %v1306 = vpop.xlane.xlu0 %1305
        %v1307 = vrcp.pop %v1303
        %v1308 = vrcp.pop %v1306
        %v1309 = vmul.f32 %v1298, %v1307
        %v1310 = vmul.f32 %v1300, %v1308
        %v1311 = vpack.c.bf16 %v1309, %v1309
        %v1312 = vpack.c.bf16 %v1310, %v1310
        %1313 = vrot.lane.b32.xlu0 %v1235, 48
        %v1314 = vpop.permute.xlu0 %1313
        %v1316 = vsel %vm968, %v1311, 0
        %v1319 = vsel %vm1051, %v1314, 0
        %1321 = vmatpush.bf16.msra.mxu0 0
        %1322 = vmatpush.bf16.msra.mxu0 0
        %1323 = vmatpush.bf16.msra.mxu0 0
        %1324 = vmatpush.bf16.msra.mxu0 0
        %1325 = vmatpush.bf16.msra.mxu0 0
        %1326 = vmatpush.bf16.msra.mxu0 0
        %1327 = vmatpush.bf16.msra.mxu0 0
        %1328 = vmatpush.bf16.msra.mxu0 %v1319
        %1329 = vmatmul.bf16.gmra.mxu0 %v1316
        %v1330 = vpop.f32.mrf.mxu0
        %v1331 = vadd.f32 0.0, %v1330
        %v1332 = vpop.f32.mrf.mxu0
        %1333 = vdwg.mxu0
        %1334 = vrot.lane.b32.xlu0 %v1261, 48
        %v1335 = vpop.permute.xlu0 %1334
        %v1337 = vsel %vm968, %v1312, 0
        %v1340 = vsel %vm1051, %v1335, 0
        %1342 = vmatpush.bf16.msra.mxu0 0
        %1343 = vmatpush.bf16.msra.mxu0 0
        %1344 = vmatpush.bf16.msra.mxu0 0
        %1345 = vmatpush.bf16.msra.mxu0 0
        %1346 = vmatpush.bf16.msra.mxu0 0
        %1347 = vmatpush.bf16.msra.mxu0 0
        %1348 = vmatpush.bf16.msra.mxu0 0
        %1349 = vmatpush.bf16.msra.mxu0 %v1340
        %1350 = vmatmul.bf16.gmra.mxu0 %v1337
        %v1351 = vpop.f32.mrf.mxu0
        %v1352 = vadd.f32 0.0, %v1351
        %v1353 = vpop.f32.mrf.mxu0
        %1354 = vdwg.mxu0
        %v1355 = vpack.c.bf16 %v1331, %v1331
        %v1356 = vpack.c.bf16 %v1352, %v1352
        %1359 = vrot.lane.b32.xlu0 %v1355, 16
        %v1360 = vpop.permute.xlu0 %1359
        %1361 = vrot.lane.b32.xlu0 %v1356, 16
        %v1362 = vpop.permute.xlu0 %1361
        %vm1365 = vcmask 191616
        %1366 = vst.msk [vmem:[#allocation4] sm:$0xf] %vm1365, %v1360
        %1367 = vst.msk [vmem:[#allocation4 + $0x4] sm:$0xf] %vm1365, %v1362
        %v1368 = vld [vmem:[#allocation3] sm:$0xf]
        %v1369 = vld [vmem:[#allocation3 + $0x4] sm:$0xf]
        %v1371 = vunpack.c.l.b16 %v1368
        %v1372 = vpack.c.b16 %v1371, %v1371
        %1373 = vrot.lane.b32.xlu0 %v1372, 104
        %v1374 = vpop.permute.xlu0 %1373
        %1375 = vrot.lane.b32.xlu0 %v1372, 72
        %v1376 = vpop.permute.xlu0 %1375
        %v1378 = vsel %vm968, %v1374, 0
        %v1381 = vsel %vm968, %v1376, 0
        %1383 = vmatpush.bf16.xpose.msra.mxu0 0
        %1384 = vmatpush.bf16.xpose.msra.mxu0 0
        %1385 = vmatpush.bf16.xpose.msra.mxu0 0
        %1386 = vmatpush.bf16.xpose.msra.mxu0 0
        %1387 = vmatpush.bf16.xpose.msra.mxu0 0
        %1388 = vmatpush.bf16.xpose.msra.mxu0 0
        %1389 = vmatpush.bf16.xpose.msra.mxu0 0
        %1390 = vmatpush.bf16.xpose.msra.mxu0 %v1381
        %1391 = vmatmul.bf16.gmra.mxu0 %v1378
        %v1392 = vpop.f32.mrf.mxu0
        %v1393 = vadd.f32 0.0, %v1392
        %v1394 = vpop.f32.mrf.mxu0
        %1395 = vdwg.mxu0
        %v1397 = vunpack.c.l.b16 %v1369
        %v1398 = vpack.c.b16 %v1397, %v1397
        %1399 = vrot.lane.b32.xlu0 %v1398, 104
        %v1400 = vpop.permute.xlu0 %1399
        %1401 = vrot.lane.b32.xlu0 %v1398, 72
        %v1402 = vpop.permute.xlu0 %1401
        %v1404 = vsel %vm968, %v1400, 0
        %v1407 = vsel %vm968, %v1402, 0
        %1409 = vmatpush.bf16.xpose.msra.mxu0 0
        %1410 = vmatpush.bf16.xpose.msra.mxu0 0
        %1411 = vmatpush.bf16.xpose.msra.mxu0 0
        %1412 = vmatpush.bf16.xpose.msra.mxu0 0
        %1413 = vmatpush.bf16.xpose.msra.mxu0 0
        %1414 = vmatpush.bf16.xpose.msra.mxu0 0
        %1415 = vmatpush.bf16.xpose.msra.mxu0 0
        %1416 = vmatpush.bf16.xpose.msra.mxu0 %v1407
        %1417 = vmatmul.bf16.gmra.mxu0 %v1404
        %v1418 = vpop.f32.mrf.mxu0
        %v1419 = vadd.f32 0.0, %v1418
        %v1420 = vpop.f32.mrf.mxu0
        %1421 = vdwg.mxu0
        %v1422 = vmul.f32 %v1393, 0.35355338
        %v1423 = vmul.f32 %v1419, 0.35355338
        %v1424 = vadd.f32 %v1422, %v1016
        %v1425 = vadd.f32 %v1423, %v1017
        %v1426 = vsel %vm968, %v1424, -inf
        %1427 = vmax.xlane.f32.xlu0 %v1426
        %v1428 = vpop.xlane.xlu0 %1427
        %v1429 = vsel %vm968, %v1425, -inf
        %1430 = vmax.xlane.f32.xlu0 %v1429
        %v1431 = vpop.xlane.xlu0 %1430
        %v1432 = vsub.f32 %v1424, %v1428
        %v1433 = vsub.f32 %v1425, %v1431
        %v1434 = vmul.f32 %v1432, 1.442695
        %v1435 = vpow.pop %v1434
        %v1436 = vmul.f32 %v1433, 1.442695
        %v1437 = vpow.pop %v1436
        %v1438 = vsel %vm968, %v1435, 0.0
        %1439 = vadd.xlane.f32.xlu0 %v1438
        %v1440 = vpop.xlane.xlu0 %1439
        %v1441 = vsel %vm968, %v1437, 0.0
        %1442 = vadd.xlane.f32.xlu0 %v1441
        %v1443 = vpop.xlane.xlu0 %1442
        %v1444 = vrcp.pop %v1440
        %v1445 = vrcp.pop %v1443
        %v1446 = vmul.f32 %v1435, %v1444
        %v1447 = vmul.f32 %v1437, %v1445
        %v1448 = vpack.c.bf16 %v1446, %v1446
        %v1449 = vpack.c.bf16 %v1447, %v1447
        %1450 = vrot.lane.b32.xlu0 %v1372, 40
        %v1451 = vpop.permute.xlu0 %1450
        %v1453 = vsel %vm968, %v1448, 0
        %v1456 = vsel %vm1051, %v1451, 0
        %1458 = vmatpush.bf16.msra.mxu0 0
        %1459 = vmatpush.bf16.msra.mxu0 0
        %1460 = vmatpush.bf16.msra.mxu0 0
        %1461 = vmatpush.bf16.msra.mxu0 0
        %1462 = vmatpush.bf16.msra.mxu0 0
        %1463 = vmatpush.bf16.msra.mxu0 0
        %1464 = vmatpush.bf16.msra.mxu0 0
        %1465 = vmatpush.bf16.msra.mxu0 %v1456
        %1466 = vmatmul.bf16.gmra.mxu0 %v1453
        %v1467 = vpop.f32.mrf.mxu0
        %v1468 = vadd.f32 0.0, %v1467
        %v1469 = vpop.f32.mrf.mxu0
        %1470 = vdwg.mxu0
        %1471 = vrot.lane.b32.xlu0 %v1398, 40
        %v1472 = vpop.permute.xlu0 %1471
        %v1474 = vsel %vm968, %v1449, 0
        %v1477 = vsel %vm1051, %v1472, 0
        %1479 = vmatpush.bf16.msra.mxu0 0
        %1480 = vmatpush.bf16.msra.mxu0 0
        %1481 = vmatpush.bf16.msra.mxu0 0
        %1482 = vmatpush.bf16.msra.mxu0 0
        %1483 = vmatpush.bf16.msra.mxu0 0
        %1484 = vmatpush.bf16.msra.mxu0 0
        %1485 = vmatpush.bf16.msra.mxu0 0
        %1486 = vmatpush.bf16.msra.mxu0 %v1477
        %1487 = vmatmul.bf16.gmra.mxu0 %v1474
        %v1488 = vpop.f32.mrf.mxu0
        %v1489 = vadd.f32 0.0, %v1488
        %v1490 = vpop.f32.mrf.mxu0
        %1491 = vdwg.mxu0
        %v1492 = vpack.c.bf16 %v1468, %v1468
        %v1493 = vpack.c.bf16 %v1489, %v1489
        %1496 = vrot.lane.b32.xlu0 %v1492, 24
        %v1497 = vpop.permute.xlu0 %1496
        %1498 = vrot.lane.b32.xlu0 %v1493, 24
        %v1499 = vpop.permute.xlu0 %1498
        %vm1502 = vcmask 257216
        %1503 = vst.msk [vmem:[#allocation4] sm:$0xf] %vm1502, %v1497
        %1504 = vst.msk [vmem:[#allocation4 + $0x4] sm:$0xf] %vm1502, %v1499
        %v1505 = vld [vmem:[#allocation4] sm:$0xf]
        %v1506 = vld [vmem:[#allocation4 + $0x4] sm:$0xf]
        %v1508 = vperm.slane %v899, 0
        %v1512 = vunpack.c.l.b16 %v1505
        %v1513 = vunpack.c.l.b16 %v1506
        %v1514 = vpack.c.b16 %v1513, %v1512
        %v1519 = vunpack.c.l.b16 %v895
        %v1520 = vunpack.c.l.b16 %v896
        %v1521 = vunpack.c.l.b16 %v897
        %v1522 = vunpack.c.l.b16 %v898
        %v1523 = vpack.c.b16 %v1520, %v1519
        %v1524 = vpack.c.b16 %v1522, %v1521
        %v1528 = vsel %vm936, %v1514, 0
        %1530 = vmatpush.bf16.msra.mxu0 0
        %1531 = vmatpush.bf16.msra.mxu0 0
        %1532 = vmatpush.bf16.msra.mxu0 0
        %1533 = vmatpush.bf16.msra.mxu0 0
        %1534 = vmatpush.bf16.msra.mxu0 0
        %1535 = vmatpush.bf16.msra.mxu0 0
        %1536 = vmatpush.bf16.msra.mxu0 %v1524
        %1537 = vmatpush.bf16.msra.mxu0 %v1523
        %1538 = vmatmul.bf16.gmra.mxu0 %v1528
        %v1539 = vpop.f32.mrf.mxu0
        %v1540 = vadd.f32 %v1508, %v1539
        %v1541 = vpop.f32.mrf.mxu0
        %v1542 = vadd.f32 %v1508, %v1541
        %1543 = vdwg.mxu0
        %v1544 = vadd.f32 %v918, %v1540
        %v1545 = vadd.f32 %v919, %v1542
        %v1546 = vsel %vm936, %v1544, 0.0
        %1547 = vadd.xlane.f32.xlu0 %v1546
        %v1548 = vpop.xlane.xlu0 %1547
        %v1549 = vsel %vm936, %v1545, 0.0
        %1550 = vadd.xlane.f32.xlu0 %v1549
        %v1551 = vpop.xlane.xlu0 %1550
        %v1552 = vrcp.pop 32.0
        %v1553 = vmul.f32 32.0, %v1552
        %v1554 = vsub.f32 1.0, %v1553
        %v1555 = vmul.f32 %v1552, %v1554
        %v1556 = vadd.f32 %v1552, %v1555
        %vm1557 = vweird.f32 %v1552
        %v1558 = vsel %vm1557, %v1552, %v1556
        %v1559 = vmul.f32 %v1548, %v1558
        %v1560 = vmul.f32 %v1551, %v1558
        %v1561 = vsub.f32 %v1544, %v1559
        %v1562 = vsub.f32 %v1545, %v1560
        %v1563 = vmul.f32 %v1561, %v1561
        %v1564 = vmul.f32 %v1562, %v1562
        %v1565 = vsel %vm936, %v1563, 0.0
        %1566 = vadd.xlane.f32.xlu0 %v1565
        %v1567 = vpop.xlane.xlu0 %1566
        %v1568 = vsel %vm936, %v1564, 0.0
        %1569 = vadd.xlane.f32.xlu0 %v1568
        %v1570 = vpop.xlane.xlu0 %1569
        %v1571 = vmul.f32 %v1567, %v1558
        %v1572 = vmul.f32 %v1570, %v1558
        %v1573 = vadd.f32 %v1571, 1e-12
        %v1574 = vadd.f32 %v1572, 1e-12
        %v1575 = vrsqrt.pop %v1573
        %v1576 = vmul.f32 %v1575, %v1573
        %v1577 = vmul.f32 %v1576, %v1575
        %v1578 = vmul.f32 0.5, %v1577
        %v1579 = vsub.f32 1.5, %v1578
        %v1580 = vmul.f32 %v1575, %v1579
        %vm1581 = vweird.f32 %v1573
        %vm1582 = vweird.f32 %v1575
        %vm1583 = vmor %vm1581, %vm1582
        %v1584 = vsel %vm1583, %v1575, %v1580
        %v1585 = vrsqrt.pop %v1574
        %v1586 = vmul.f32 %v1585, %v1574
        %v1587 = vmul.f32 %v1586, %v1585
        %v1588 = vmul.f32 0.5, %v1587
        %v1589 = vsub.f32 1.5, %v1588
        %v1590 = vmul.f32 %v1585, %v1589
        %vm1591 = vweird.f32 %v1574
        %vm1592 = vweird.f32 %v1585
        %vm1593 = vmor %vm1591, %vm1592
        %v1594 = vsel %vm1593, %v1585, %v1590
        %v1595 = vmul.f32 %v1561, %v1584
        %v1596 = vmul.f32 %v1562, %v1594
        %v1598 = vperm.slane %v900, 0
        %v1600 = vmul.f32 %v1595, %v1598
        %v1601 = vmul.f32 %v1596, %v1598
        %v1603 = vperm.slane %v901, 0
        %v1605 = vadd.f32 %v1600, %v1603
        %v1606 = vadd.f32 %v1601, %v1603
        %v1607 = vpack.c.bf16 %v1606, %v1605
        %v1609 = vperm.slane %v906, 0
        %v1615 = vunpack.c.l.b16 %v902
        %v1616 = vunpack.c.l.b16 %v903
        %v1617 = vunpack.c.l.b16 %v904
        %v1618 = vunpack.c.l.b16 %v905
        %v1619 = vpack.c.b16 %v1616, %v1615
        %v1620 = vpack.c.b16 %v1618, %v1617
        %v1624 = vsel %vm936, %v1607, 0
        %1626 = vmatpush.bf16.msra.mxu0 0
        %1627 = vmatpush.bf16.msra.mxu0 0
        %1628 = vmatpush.bf16.msra.mxu0 0
        %1629 = vmatpush.bf16.msra.mxu0 0
        %1630 = vmatpush.bf16.msra.mxu0 0
        %1631 = vmatpush.bf16.msra.mxu0 0
        %1632 = vmatpush.bf16.msra.mxu0 %v1620
        %1633 = vmatpush.bf16.msra.mxu0 %v1619
        %1634 = vmatmul.bf16.gmra.mxu0 %v1624
        %v1635 = vpop.f32.mrf.mxu0
        %v1636 = vadd.f32 %v1609, %v1635
        %v1637 = vpop.f32.mrf.mxu0
        %v1638 = vadd.f32 %v1609, %v1637
        %1639 = vdwg.mxu0
        %v1640 = vmul.f32 %v1636, %v1636
        %v1641 = vmul.f32 %v1638, %v1638
        %v1642 = vmul.f32 %v1636, %v1640
        %v1643 = vmul.f32 %v1638, %v1641
        %v1644 = vmul.f32 %v1642, 0.044715
        %v1645 = vmul.f32 %v1643, 0.044715
        %v1646 = vadd.f32 %v1636, %v1644
        %v1647 = vadd.f32 %v1638, %v1645
        %v1648 = vmul.f32 %v1646, 0.7978846
        %v1649 = vmul.f32 %v1647, 0.7978846
        %v1650 = vtanh.pop %v1648
        %v1651 = vtanh.pop %v1649
        %v1652 = vadd.f32 %v1650, 1.0
        %v1653 = vadd.f32 %v1651, 1.0
        %v1654 = vmul.f32 %v1652, 0.5
        %v1655 = vmul.f32 %v1653, 0.5
        %v1656 = vmul.f32 %v1636, %v1654
        %v1657 = vmul.f32 %v1638, %v1655
        %v1658 = vpack.c.bf16 %v1657, %v1656
        %v1660 = vperm.slane %v915, 0
        %v1670 = vunpack.c.l.b16 %v907
        %v1671 = vunpack.c.l.b16 %v908
        %v1672 = vunpack.c.l.b16 %v909
        %v1673 = vunpack.c.l.b16 %v910
        %v1674 = vunpack.c.l.b16 %v911
        %v1675 = vunpack.c.l.b16 %v912
        %v1676 = vunpack.c.l.b16 %v913
        %v1677 = vunpack.c.l.b16 %v914
        %v1678 = vpack.c.b16 %v1671, %v1670
        %v1679 = vpack.c.b16 %v1673, %v1672
        %v1680 = vpack.c.b16 %v1675, %v1674
        %v1681 = vpack.c.b16 %v1677, %v1676
        %vm1686 = vcmask 523264
        %v1688 = vsel %vm1686, %v1658, 0
        %1690 = vmatpush.bf16.msra.mxu0 0
        %1691 = vmatpush.bf16.msra.mxu0 0
        %1692 = vmatpush.bf16.msra.mxu0 0
        %1693 = vmatpush.bf16.msra.mxu0 0
        %1694 = vmatpush.bf16.msra.mxu0 %v1681
        %1695 = vmatpush.bf16.msra.mxu0 %v1680
        %1696 = vmatpush.bf16.msra.mxu0 %v1679
        %1697 = vmatpush.bf16.msra.mxu0 %v1678
        %1698 = vmatmul.bf16.gmra.mxu0 %v1688
        %v1699 = vpop.f32.mrf.mxu0
        %v1700 = vadd.f32 %v1660, %v1699
        %v1701 = vpop.f32.mrf.mxu0
        %v1702 = vadd.f32 %v1660, %v1701
        %1703 = vdwg.mxu0
        %v1704 = vadd.f32 %v1605, %v1700
        %v1705 = vadd.f32 %v1606, %v1702
        %v1706 = vsel %vm936, %v1704, 0.0
        %1707 = vadd.xlane.f32.xlu0 %v1706
        %v1708 = vpop.xlane.xlu0 %1707
        %v1709 = vsel %vm936, %v1705, 0.0
        %1710 = vadd.xlane.f32.xlu0 %v1709
        %v1711 = vpop.xlane.xlu0 %1710
        %v1712 = vmul.f32 %v1708, %v1558
        %v1713 = vmul.f32 %v1711, %v1558
        %v1714 = vsub.f32 %v1704, %v1712
        %v1715 = vsub.f32 %v1705, %v1713
        %v1716 = vmul.f32 %v1714, %v1714
        %v1717 = vmul.f32 %v1715, %v1715
        %v1718 = vsel %vm936, %v1716, 0.0
        %1719 = vadd.xlane.f32.xlu0 %v1718
        %v1720 = vpop.xlane.xlu0 %1719
        %v1721 = vsel %vm936, %v1717, 0.0
        %1722 = vadd.xlane.f32.xlu0 %v1721
        %v1723 = vpop.xlane.xlu0 %1722
        %v1724 = vmul.f32 %v1720, %v1558
        %v1725 = vmul.f32 %v1723, %v1558
        %v1726 = vadd.f32 %v1724, 1e-12
        %v1727 = vadd.f32 %v1725, 1e-12
        %v1728 = vrsqrt.pop %v1726
        %v1729 = vmul.f32 %v1728, %v1726
        %v1730 = vmul.f32 %v1729, %v1728
        %v1731 = vmul.f32 0.5, %v1730
        %v1732 = vsub.f32 1.5, %v1731
        %v1733 = vmul.f32 %v1728, %v1732
        %vm1734 = vweird.f32 %v1726
        %vm1735 = vweird.f32 %v1728
        %vm1736 = vmor %vm1734, %vm1735
        %v1737 = vsel %vm1736, %v1728, %v1733
        %v1738 = vrsqrt.pop %v1727
        %v1739 = vmul.f32 %v1738, %v1727
        %v1740 = vmul.f32 %v1739, %v1738
        %v1741 = vmul.f32 0.5, %v1740
        %v1742 = vsub.f32 1.5, %v1741
        %v1743 = vmul.f32 %v1738, %v1742
        %vm1744 = vweird.f32 %v1727
        %vm1745 = vweird.f32 %v1738
        %vm1746 = vmor %vm1744, %vm1745
        %v1747 = vsel %vm1746, %v1738, %v1743
        %v1748 = vmul.f32 %v1714, %v1737
        %v1749 = vmul.f32 %v1715, %v1747
        %v1751 = vperm.slane %v916, 0
        %v1753 = vmul.f32 %v1748, %v1751
        %v1754 = vmul.f32 %v1749, %v1751
        %v1756 = vperm.slane %v917, 0
        %v1758 = vadd.f32 %v1753, %v1756
        %v1759 = vadd.f32 %v1754, %v1756
        %1760 = vst.msk [vmem:[#allocation2] sm:$0xff] %vm936, %v1758
        %1761 = vst.msk [vmem:[#allocation2 + $0x8] sm:$0xff] %vm936, %v1759
        %p1762 = scmp.eq.s32.totalorder %s37, 1
        // Predicated region
        $region117: #{tpu_custom_call.1} parent=87 // pred_check
          %p1763 = pneg %p1762
        $region118: #{tpu_custom_call.1} parent=87 // pred_check_branch
          %1765 = sbr.rel (%p1763) target = $region120
        $region119: #{tpu_custom_call.1} parent=87 // pred_region
          %v1766 = vld [vmem:[#allocation2] ss:$8 sm:$0x3]
          %v1767 = vpack.c.bf16 %v1766, %v1766
          %v1768 = vld [vmem:[#allocation14] sm:$0xf]
          %v1769 = vld [vmem:[#allocation14 + $0x4] sm:$0xf]
          %v1770 = vld [vmem:[#allocation14 + $0x8] sm:$0xf]
          %v1771 = vld [vmem:[#allocation14 + $0xc] sm:$0xf]
          %v1772 = vld [vmem:[%s17] sm:$0x1]
          %v1774 = vperm.slane %v1772, 0
          %v1780 = vunpack.c.l.b16 %v1768
          %v1781 = vunpack.c.l.b16 %v1769
          %v1782 = vunpack.c.l.b16 %v1770
          %v1783 = vunpack.c.l.b16 %v1771
          %v1784 = vpack.c.b16 %v1781, %v1780
          %v1785 = vpack.c.b16 %v1783, %v1782
          %v1789 = vsel %vm936, %v1767, 0
          %1791 = vmatpush.bf16.msra.mxu0 0
          %1792 = vmatpush.bf16.msra.mxu0 0
          %1793 = vmatpush.bf16.msra.mxu0 0
          %1794 = vmatpush.bf16.msra.mxu0 0
          %1795 = vmatpush.bf16.msra.mxu0 0
          %1796 = vmatpush.bf16.msra.mxu0 0
          %1797 = vmatpush.bf16.msra.mxu0 %v1785
          %1798 = vmatpush.bf16.msra.mxu0 %v1784
          %1799 = vmatmul.bf16.gmra.mxu0 %v1789
          %v1800 = vpop.f32.mrf.mxu0
          %v1801 = vadd.f32 %v1774, %v1800
          %v1802 = vpop.f32.mrf.mxu0
          %1803 = vdwg.mxu0
          %vm1804 = vcmask 1041408
          %v1805 = vsel %vm1804, %v1801, -inf
          %1806 = vmax.xlane.f32.xlu0 %v1805
          %v1807 = vpop.xlane.xlu0 %1806
          %v1808 = vsub.f32 %v1801, %v1807
          %v1809 = vmul.f32 %v1808, 1.442695
          %v1810 = vpow.pop %v1809
          %v1811 = vsel %vm1804, %v1810, 0.0
          %1812 = vadd.xlane.f32.xlu0 %v1811
          %v1813 = vpop.xlane.xlu0 %1812
          %v1814 = vrcp.pop %v1813
          %v1815 = vmul.f32 %v1813, %v1814
          %v1816 = vsub.f32 1.0, %v1815
          %v1817 = vmul.f32 %v1814, %v1816
          %v1818 = vadd.f32 %v1814, %v1817
          %vm1819 = vweird.f32 %v1813
          %vm1820 = vweird.f32 %v1814
          %vm1821 = vmor %vm1819, %vm1820
          %v1822 = vsel %vm1821, %v1814, %v1818
          %v1823 = vand.u32 2147483647, %v1813
          %vm1824 = vcmp.eq.f32.partialorder %v1823, 8.507059e+37
          %v1825 = vand.u32 %v1813, 2147483648
          %v1826 = vor.u32 1.1754944e-38, %v1825
          %v1827 = vsel %vm1824, %v1826, %v1822
          %v1828 = vmul.f32 %v1810, %v1827
          %1829 = vst [vmem:[#allocation15] sm:$0x3] %v1828
        $region120: #{tpu_custom_call.1} parent=87 // pred_fallthru
          _
        // Predicated region
        $region121: #{tpu_custom_call.1} parent=87 // pred_check
          %p1830 = pneg %p467
        $region122: #{tpu_custom_call.1} parent=87 // pred_check_branch
          %1832 = sbr.rel (%p1830) target = $region124
        $region123: #{tpu_custom_call.1} parent=87 // pred_region
          %1834 = vsyncadd [#allocation8], 0
          %s1836 = sshll.u32 [#allocation15], 4
          %s1837 = int_to_ptr.vmem [resolvable:$true] %s1836
          %s1838 = sshll.u32 %s18, 4
          %s1839 = int_to_ptr.hbm [resolvable:$true] %s1838
          %1841 = dma.vmem_to_hbm [thread:$0]  %s1837, 32, %s1839, [#allocation8]
        $region124: #{tpu_custom_call.1} parent=87 // pred_fallthru
          _
        // Predicated region
        $region125: #{tpu_custom_call.1} parent=87 // pred_check
          %p1842 = pneg %p467
        $region126: #{tpu_custom_call.1} parent=87 // pred_check_branch
          %1844 = sbr.rel (%p1842) target = $region128
        $region127: #{tpu_custom_call.1} parent=87 // pred_region
          %1846 = dma.done [#allocation8], 32
        $region128: #{tpu_custom_call.1} parent=87 // pred_fallthru
          _
      $region88: #{tpu_custom_call.1} parent=5 // pred_fallthru
        _
      %p1847 = scmp.le.s32.totalorder 2, %s32
      // Predicated region
      $region129: #{tpu_custom_call.1} parent=5 // pred_check
        %p1848 = pneg %p1847
      $region130: #{tpu_custom_call.1} parent=5 // pred_check_branch
        %1850 = sbr.rel (%p1848) target = $region132
      $region131: #{tpu_custom_call.1} parent=5 // pred_region
        %s1851 = ssub.s32 %s32, 2
      $region132: #{tpu_custom_call.1} parent=5 // pred_fallthru
        _
    $region6: #{tpu_custom_call.1} parent=1 // loop_footer
      %s36 = sadd.s32 1, %s32
    $region7: #{tpu_custom_call.1} parent=1 // loop_footer_branch
      %31 = sbr.rel target = $region3
    $region8: #{tpu_custom_call.1} parent=1 // loop_exit
      _
    %1852 = vsyncpa [#allocation7], 1
    %s1853 = scalar_lea.sflag [#allocation7], 1
    %1854 = vsyncpa %s1853, 1
    %1855 = vsyncpa [#allocation10], 1
    %s1856 = scalar_lea.sflag [#allocation10], 1
    %1857 = vsyncpa %s1856, 1
    %1858 = vsyncpa [#allocation13], 1
    %s1859 = scalar_lea.sflag [#allocation13], 1
    %1860 = vsyncpa %s1859, 1
    %1861 = vsyncpa [#allocation8], 1
    %s1862 = scalar_lea.sflag [#allocation8], 1
    %1863 = vsyncpa %s1862, 1
  %1864 = vsyncmov [#allocation5]
  %s1865 = vpop.sfrf %1864
  %p1866 = scmp.eq.s32.totalorder %s1865, 0
  %p1867 = pneg %p1866
  %1869 = shalt.err (%p1867)

</llo_original>
